<compile_context>
chip_gen: v6e
topology: v6e:2x2x1
jax: 0.10.0
libtpu: 0.0.40
codegen_flags: <defaults>
</compile_context>

<pallas_src>
import jax
import jax.numpy as jnp
import numpy as np
from jax.experimental import pallas as pl
from jax.experimental.pallas import tpu as pltpu

EPS = 1e-5


def basic_block_kernel(x_ref, b1m_ref, g1_ref, be1_ref, b2m_ref, g2_ref, be2_ref,
                       sel_ref, selT_ref, out_ref, pad_ref):
    N, Hp, WC = pad_ref.shape
    H = Hp - 2
    C = sel_ref.shape[1]
    M = N * H * (WC // C)          # samples per channel for BN stats
    inv_m = 1.0 / float(M)

    # ---- H-halo scratch (bf16): zero ONLY the two halo rows per image, fill
    #      interior with x.  W-padding is folded into the banded weights. ----
    pad_ref[:, 0:1, :] = jnp.zeros((N, 1, WC), jnp.bfloat16)
    pad_ref[:, Hp - 1:Hp, :] = jnp.zeros((N, 1, WC), jnp.bfloat16)
    pad_ref[:, 1:H + 1, :] = x_ref[...].astype(jnp.bfloat16)

    def conv3x3(bm_ref):
        # 3 vertical taps, each a fully lane-dense (N*H, WC) @ (WC, WC) bf16
        # matmul with f32 accumulation on the MXU.
        acc = jnp.dot(pad_ref[:, 0:H, :].reshape(N * H, WC), bm_ref[0],
                      preferred_element_type=jnp.float32)
        for dh in (1, 2):
            acc = acc + jnp.dot(pad_ref[:, dh:dh + H, :].reshape(N * H, WC),
                                bm_ref[dh], preferred_element_type=jnp.float32)
        return acc                                          # (N*H, WC) f32

    def bn_affine(acc, g_ref, be_ref):
        # Single-pass per-channel sum / sum-of-squares via selector matmul
        # (lanes with the same channel are summed on the MXU, in f32), then
        # fold the normalization into a per-lane scale/shift broadcast.
        s = jnp.sum(jnp.dot(acc, sel_ref[...],
                            preferred_element_type=jnp.float32),
                    axis=0, keepdims=True)                  # (1, C)
        ss = jnp.sum(jnp.dot(acc * acc, sel_ref[...],
                             preferred_element_type=jnp.float32),
                     axis=0, keepdims=True)                 # (1, C)
        mean = s * inv_m
        var = ss * inv_m - mean * mean                      # biased batch var
        scale_c = g_ref[...] * jax.lax.rsqrt(var + EPS)     # (1, C)
        shift_c = be_ref[...] - mean * scale_c              # (1, C)
        scale = jnp.dot(scale_c, selT_ref[...],
                        preferred_element_type=jnp.float32)  # (1, WC)
        shift = jnp.dot(shift_c, selT_ref[...],
                        preferred_element_type=jnp.float32)  # (1, WC)
        return scale, shift

    # ---- conv1 + bn1 + relu ----
    acc1 = conv3x3(b1m_ref)
    scale1, shift1 = bn_affine(acc1, g1_ref, be1_ref)
    y1 = jnp.maximum(acc1 * scale1 + shift1, 0.0)           # (N*H, WC) f32

    # Reuse the same halo scratch for conv2's input (halo rows still zero);
    # single cast to bf16 here instead of one per tap.
    pad_ref[:, 1:H + 1, :] = y1.astype(jnp.bfloat16).reshape(N, H, WC)

    # ---- conv2 + bn2 + residual + relu ----
    acc2 = conv3x3(b2m_ref)
    scale2, shift2 = bn_affine(acc2, g2_ref, be2_ref)
    z = acc2 * scale2 + shift2
    out_ref[...] = jnp.maximum(z + x_ref[...].reshape(N * H, WC), 0.0)


def _band_weights(w, W):
    """HWIO (3,3,C,C) conv weights -> (3, W*C, W*C) banded matrices (one per
    vertical tap dh) that implement the horizontal taps + channel mixing with
    implicit zero-padding in W."""
    C = w.shape[2]
    wi = jnp.arange(W)[:, None]                 # input column
    wo = jnp.arange(W)[None, :]                 # output column
    dw = wi - wo + 1                            # horizontal tap index
    valid = ((dw >= 0) & (dw <= 2)).astype(w.dtype)
    dwc = jnp.clip(dw, 0, 2)
    b = w[:, dwc]                               # (3, W, W, C, C): [dh, wi, wo, ci, co]
    b = b * valid[None, :, :, None, None]
    b = jnp.transpose(b, (0, 1, 3, 2, 4)).reshape(3, W * C, W * C)
    return b


def basic_block(x_nhwc, w1, g1, b1, w2, g2, b2):
    """x_nhwc: (N, H, W, C) f32.  w*: (3,3,C,C) HWIO.  g*/b*: (C,) f32."""
    N, H, W, C = x_nhwc.shape
    WC = W * C                                   # lane-dense working width

    # Weight / constant preprocessing (wrapper glue, done once per call here;
    # in a real model these are precomputed).
    B1 = _band_weights(w1, W).astype(jnp.bfloat16)       # (3, WC, WC)
    B2 = _band_weights(w2, W).astype(jnp.bfloat16)
    sel = jnp.tile(jnp.eye(C, dtype=jnp.float32), (W, 1))   # (WC, C) channel-sum selector
    selT = jnp.tile(jnp.eye(C, dtype=jnp.float32), (1, W))  # (C, WC) channel->lane broadcast

    x = x_nhwc.reshape(N, H, WC)                 # free contiguous reshape

    out = pl.pallas_call(
        basic_block_kernel,
        out_shape=jax.ShapeDtypeStruct((N * H, WC), jnp.float32),
        in_specs=[pl.BlockSpec(memory_space=pltpu.MemorySpace.VMEM)] * 9,
        out_specs=pl.BlockSpec(memory_space=pltpu.MemorySpace.VMEM),
        scratch_shapes=[pltpu.VMEM((N, H + 2, WC), jnp.bfloat16)],
        compiler_params=pltpu.CompilerParams(vmem_limit_bytes=32 * 1024 * 1024),
    )(x, B1, g1.reshape(1, C), b1.reshape(1, C),
      B2, g2.reshape(1, C), b2.reshape(1, C), sel, selT)

    return out.reshape(N, H, W, C)


def reference(x, w1, g1, b1, w2, g2, b2):
    """Pure-JAX f32 reference (NHWC), mirrors the PyTorch forward."""
    def conv(x, w):
        return jax.lax.conv_general_dilated(
            x, w, window_strides=(1, 1), padding="SAME",
            dimension_numbers=("NHWC", "HWIO", "NHWC"))

    def bn(x, g, b):
        m = jnp.mean(x, axis=(0, 1, 2), keepdims=True)
        v = jnp.mean((x - m) ** 2, axis=(0, 1, 2), keepdims=True)
        return (x - m) * jax.lax.rsqrt(v + EPS) * g + b

    y = jax.nn.relu(bn(conv(x, w1), g1, b1))
    z = bn(conv(y, w2), g2, b2)
    return jax.nn.relu(z + x)


if __name__ == "__main__":
    # BasicBlock with stride=1 and in_channels == out_channels (required for
    # the un-projected residual add).  W*C = 128 -> fully lane-dense.
    N, C, H, W = 2, 8, 16, 16
    key = jax.random.PRNGKey(0)
    ks = jax.random.split(key, 7)

    x_nchw = jax.random.normal(ks[0], (N, C, H, W), jnp.float32)  # PyTorch layout
    x = jnp.transpose(x_nchw, (0, 2, 3, 1))                       # NCHW -> NHWC

    w1 = 0.1 * jax.random.normal(ks[1], (3, 3, C, C), jnp.float32)
    w2 = 0.1 * jax.random.normal(ks[2], (3, 3, C, C), jnp.float32)
    g1 = 1.0 + 0.1 * jax.random.normal(ks[3], (C,), jnp.float32)
    b1 = 0.1 * jax.random.normal(ks[4], (C,), jnp.float32)
    g2 = 1.0 + 0.1 * jax.random.normal(ks[5], (C,), jnp.float32)
    b2 = 0.1 * jax.random.normal(ks[6], (C,), jnp.float32)

    out = jax.block_until_ready(basic_block(x, w1, g1, b1, w2, g2, b2))

    ref = reference(x, w1, g1.reshape(1, 1, 1, C), b1.reshape(1, 1, 1, C),
                    w2, g2.reshape(1, 1, 1, C), b2.reshape(1, 1, 1, C))
    # Tolerance relaxed vs a pure-f32 version because both convs run on the
    # MXU in bf16 (f32 accumulation).
    np.testing.assert_allclose(np.asarray(out), np.asarray(ref),
                               rtol=6e-2, atol=6e-2)
    print("KERNEL_OK")
</pallas_src>

<mosaic_0001>
module attributes {stable_mosaic.version = 11 : i64} {
  func.func @basic_block_kernel(%arg0: memref<2x16x128xf32, #tpu.memory_space<vmem>>, %arg1: memref<3x128x128xbf16, #tpu.memory_space<vmem>>, %arg2: memref<1x8xf32, #tpu.memory_space<vmem>>, %arg3: memref<1x8xf32, #tpu.memory_space<vmem>>, %arg4: memref<3x128x128xbf16, #tpu.memory_space<vmem>>, %arg5: memref<1x8xf32, #tpu.memory_space<vmem>>, %arg6: memref<1x8xf32, #tpu.memory_space<vmem>>, %arg7: memref<128x8xf32, #tpu.memory_space<vmem>>, %arg8: memref<8x128xf32, #tpu.memory_space<vmem>>, %arg9: memref<32x128xf32, #tpu.memory_space<vmem>>, %arg10: memref<2x18x128xbf16, #tpu.memory_space<vmem>>) attributes {dimension_semantics = [], scalar_prefetch = 0 : i64, scratch_operands = 1 : i64, tpu.core_type = #tpu.core_type<tc>} {
    %cst = arith.constant 0.000000e+00 : bf16
    %0 = vector.broadcast %cst : bf16 to vector<2x1x128xbf16>
    %c0 = arith.constant 0 : index
    %c0_0 = arith.constant 0 : index
    %c0_1 = arith.constant 0 : index
    %1 = vector.load %arg10[%c0, %c0_0, %c0_1] : memref<2x18x128xbf16, #tpu.memory_space<vmem>>, vector<2x1x128xbf16>
    tpu.vector_store %arg10[%c0, %c0_0, %c0_1], %0 {strides = array<i32>} : memref<2x18x128xbf16, #tpu.memory_space<vmem>>, vector<2x1x128xbf16>,
    %cst_2 = arith.constant 0.000000e+00 : bf16
    %2 = vector.broadcast %cst_2 : bf16 to vector<2x1x128xbf16>
    %c0_3 = arith.constant 0 : index
    %c17 = arith.constant 17 : index
    %c0_4 = arith.constant 0 : index
    %3 = vector.load %arg10[%c0_3, %c17, %c0_4] : memref<2x18x128xbf16, #tpu.memory_space<vmem>>, vector<2x1x128xbf16>
    tpu.vector_store %arg10[%c0_3, %c17, %c0_4], %2 {strides = array<i32>} : memref<2x18x128xbf16, #tpu.memory_space<vmem>>, vector<2x1x128xbf16>,
    %c0_5 = arith.constant 0 : index
    %c0_6 = arith.constant 0 : index
    %c0_7 = arith.constant 0 : index
    %4 = vector.load %arg0[%c0_5, %c0_6, %c0_7] : memref<2x16x128xf32, #tpu.memory_space<vmem>>, vector<2x16x128xf32>
    %5 = arith.truncf %4 : vector<2x16x128xf32> to vector<2x16x128xbf16>
    %c0_8 = arith.constant 0 : index
    %c1 = arith.constant 1 : index
    %c0_9 = arith.constant 0 : index
    %6 = vector.load %arg10[%c0_8, %c1, %c0_9] : memref<2x18x128xbf16, #tpu.memory_space<vmem>>, vector<2x16x128xbf16>
    tpu.vector_store %arg10[%c0_8, %c1, %c0_9], %5 {strides = array<i32>} : memref<2x18x128xbf16, #tpu.memory_space<vmem>>, vector<2x16x128xbf16>,
    %c0_10 = arith.constant 0 : index
    %c0_11 = arith.constant 0 : index
    %c0_12 = arith.constant 0 : index
    %7 = vector.load %arg10[%c0_10, %c0_11, %c0_12] : memref<2x18x128xbf16, #tpu.memory_space<vmem>>, vector<2x16x128xbf16>
    %8 = vector.shape_cast %7 : vector<2x16x128xbf16> to vector<32x128xbf16>
    %c0_13 = arith.constant 0 : index
    %c0_14 = arith.constant 0 : index
    %c0_15 = arith.constant 0 : index
    %9 = vector.load %arg1[%c0_13, %c0_14, %c0_15] : memref<3x128x128xbf16, #tpu.memory_space<vmem>>, vector<1x128x128xbf16>
    %10 = vector.shape_cast %9 : vector<1x128x128xbf16> to vector<128x128xbf16>
    %cst_16 = arith.constant dense<0.000000e+00> : vector<32x128xf32>
    %11 = tpu.matmul %8, %10, %cst_16 {dimension_numbers = #tpu.dot_dimension_numbers<[1], [0], [0], [1], [0, 0, 1, 1], [], []>} : vector<32x128xbf16>, vector<128x128xbf16>, vector<32x128xf32> -> vector<32x128xf32>
    %c0_17 = arith.constant 0 : index
    %c1_18 = arith.constant 1 : index
    %c0_19 = arith.constant 0 : index
    %12 = vector.load %arg10[%c0_17, %c1_18, %c0_19] : memref<2x18x128xbf16, #tpu.memory_space<vmem>>, vector<2x16x128xbf16>
    %13 = vector.shape_cast %12 : vector<2x16x128xbf16> to vector<32x128xbf16>
    %c1_20 = arith.constant 1 : index
    %c0_21 = arith.constant 0 : index
    %c0_22 = arith.constant 0 : index
    %14 = vector.load %arg1[%c1_20, %c0_21, %c0_22] : memref<3x128x128xbf16, #tpu.memory_space<vmem>>, vector<1x128x128xbf16>
    %15 = vector.shape_cast %14 : vector<1x128x128xbf16> to vector<128x128xbf16>
    %cst_23 = arith.constant dense<0.000000e+00> : vector<32x128xf32>
    %16 = tpu.matmul %13, %15, %cst_23 {dimension_numbers = #tpu.dot_dimension_numbers<[1], [0], [0], [1], [0, 0, 1, 1], [], []>} : vector<32x128xbf16>, vector<128x128xbf16>, vector<32x128xf32> -> vector<32x128xf32>
    %17 = arith.addf %11, %16 : vector<32x128xf32>
    %c0_24 = arith.constant 0 : index
    %c2 = arith.constant 2 : index
    %c0_25 = arith.constant 0 : index
    %18 = vector.load %arg10[%c0_24, %c2, %c0_25] : memref<2x18x128xbf16, #tpu.memory_space<vmem>>, vector<2x16x128xbf16>
    %19 = vector.shape_cast %18 : vector<2x16x128xbf16> to vector<32x128xbf16>
    %c2_26 = arith.constant 2 : index
    %c0_27 = arith.constant 0 : index
    %c0_28 = arith.constant 0 : index
    %20 = vector.load %arg1[%c2_26, %c0_27, %c0_28] : memref<3x128x128xbf16, #tpu.memory_space<vmem>>, vector<1x128x128xbf16>
    %21 = vector.shape_cast %20 : vector<1x128x128xbf16> to vector<128x128xbf16>
    %cst_29 = arith.constant dense<0.000000e+00> : vector<32x128xf32>
    %22 = tpu.matmul %19, %21, %cst_29 {dimension_numbers = #tpu.dot_dimension_numbers<[1], [0], [0], [1], [0, 0, 1, 1], [], []>} : vector<32x128xbf16>, vector<128x128xbf16>, vector<32x128xf32> -> vector<32x128xf32>
    %23 = arith.addf %17, %22 : vector<32x128xf32>
    %c0_30 = arith.constant 0 : index
    %c0_31 = arith.constant 0 : index
    %24 = vector.load %arg7[%c0_30, %c0_31] : memref<128x8xf32, #tpu.memory_space<vmem>>, vector<128x8xf32>
    %cst_32 = arith.constant dense<0.000000e+00> : vector<32x8xf32>
    %25 = tpu.matmul %23, %24, %cst_32 {dimension_numbers = #tpu.dot_dimension_numbers<[1], [0], [0], [1], [0, 0, 1, 1], [], []>} : vector<32x128xf32>, vector<128x8xf32>, vector<32x8xf32> -> vector<32x8xf32>
    %cst_33 = arith.constant dense<0.000000e+00> : vector<8xf32>
    %26 = vector.multi_reduction <add>, %25, %cst_33 [0] : vector<32x8xf32> to vector<8xf32>
    %27 = vector.shape_cast %26 : vector<8xf32> to vector<1x8xf32>
    %28 = arith.mulf %23, %23 : vector<32x128xf32>
    %c0_34 = arith.constant 0 : index
    %c0_35 = arith.constant 0 : index
    %29 = vector.load %arg7[%c0_34, %c0_35] : memref<128x8xf32, #tpu.memory_space<vmem>>, vector<128x8xf32>
    %cst_36 = arith.constant dense<0.000000e+00> : vector<32x8xf32>
    %30 = tpu.matmul %28, %29, %cst_36 {dimension_numbers = #tpu.dot_dimension_numbers<[1], [0], [0], [1], [0, 0, 1, 1], [], []>} : vector<32x128xf32>, vector<128x8xf32>, vector<32x8xf32> -> vector<32x8xf32>
    %cst_37 = arith.constant dense<0.000000e+00> : vector<8xf32>
    %31 = vector.multi_reduction <add>, %30, %cst_37 [0] : vector<32x8xf32> to vector<8xf32>
    %32 = vector.shape_cast %31 : vector<8xf32> to vector<1x8xf32>
    %cst_38 = arith.constant 0.001953125 : f32
    %33 = vector.broadcast %cst_38 : f32 to vector<1x8xf32>
    %34 = arith.mulf %27, %33 : vector<1x8xf32>
    %cst_39 = arith.constant 0.001953125 : f32
    %35 = vector.broadcast %cst_39 : f32 to vector<1x8xf32>
    %36 = arith.mulf %32, %35 : vector<1x8xf32>
    %37 = arith.mulf %34, %34 : vector<1x8xf32>
    %38 = arith.subf %36, %37 : vector<1x8xf32>
    %c0_40 = arith.constant 0 : index
    %c0_41 = arith.constant 0 : index
    %39 = vector.load %arg2[%c0_40, %c0_41] : memref<1x8xf32, #tpu.memory_space<vmem>>, vector<1x8xf32>
    %cst_42 = arith.constant 9.99999974E-6 : f32
    %40 = vector.broadcast %cst_42 : f32 to vector<1x8xf32>
    %41 = arith.addf %38, %40 : vector<1x8xf32>
    %42 = math.rsqrt %41 : vector<1x8xf32>
    %43 = arith.mulf %39, %42 : vector<1x8xf32>
    %c0_43 = arith.constant 0 : index
    %c0_44 = arith.constant 0 : index
    %44 = vector.load %arg3[%c0_43, %c0_44] : memref<1x8xf32, #tpu.memory_space<vmem>>, vector<1x8xf32>
    %45 = arith.mulf %34, %43 : vector<1x8xf32>
    %46 = arith.subf %44, %45 : vector<1x8xf32>
    %c0_45 = arith.constant 0 : index
    %c0_46 = arith.constant 0 : index
    %47 = vector.load %arg8[%c0_45, %c0_46] : memref<8x128xf32, #tpu.memory_space<vmem>>, vector<8x128xf32>
    %cst_47 = arith.constant dense<0.000000e+00> : vector<1x128xf32>
    %48 = tpu.matmul %43, %47, %cst_47 {dimension_numbers = #tpu.dot_dimension_numbers<[1], [0], [0], [1], [0, 0, 1, 1], [], []>} : vector<1x8xf32>, vector<8x128xf32>, vector<1x128xf32> -> vector<1x128xf32>
    %c0_48 = arith.constant 0 : index
    %c0_49 = arith.constant 0 : index
    %49 = vector.load %arg8[%c0_48, %c0_49] : memref<8x128xf32, #tpu.memory_space<vmem>>, vector<8x128xf32>
    %cst_50 = arith.constant dense<0.000000e+00> : vector<1x128xf32>
    %50 = tpu.matmul %46, %49, %cst_50 {dimension_numbers = #tpu.dot_dimension_numbers<[1], [0], [0], [1], [0, 0, 1, 1], [], []>} : vector<1x8xf32>, vector<8x128xf32>, vector<1x128xf32> -> vector<1x128xf32>
    %51 = vector.broadcast %48 : vector<1x128xf32> to vector<32x128xf32>
    %52 = arith.mulf %23, %51 : vector<32x128xf32>
    %53 = vector.broadcast %50 : vector<1x128xf32> to vector<32x128xf32>
    %54 = arith.addf %52, %53 : vector<32x128xf32>
    %cst_51 = arith.constant 0.000000e+00 : f32
    %55 = vector.broadcast %cst_51 : f32 to vector<32x128xf32>
    %56 = arith.maximumf %54, %55 : vector<32x128xf32>
    %57 = arith.truncf %56 : vector<32x128xf32> to vector<32x128xbf16>
    %58 = vector.shape_cast %57 : vector<32x128xbf16> to vector<2x16x128xbf16>
    %c0_52 = arith.constant 0 : index
    %c1_53 = arith.constant 1 : index
    %c0_54 = arith.constant 0 : index
    %59 = vector.load %arg10[%c0_52, %c1_53, %c0_54] : memref<2x18x128xbf16, #tpu.memory_space<vmem>>, vector<2x16x128xbf16>
    tpu.vector_store %arg10[%c0_52, %c1_53, %c0_54], %58 {strides = array<i32>} : memref<2x18x128xbf16, #tpu.memory_space<vmem>>, vector<2x16x128xbf16>,
    %c0_55 = arith.constant 0 : index
    %c0_56 = arith.constant 0 : index
    %c0_57 = arith.constant 0 : index
    %60 = vector.load %arg10[%c0_55, %c0_56, %c0_57] : memref<2x18x128xbf16, #tpu.memory_space<vmem>>, vector<2x16x128xbf16>
    %61 = vector.shape_cast %60 : vector<2x16x128xbf16> to vector<32x128xbf16>
    %c0_58 = arith.constant 0 : index
    %c0_59 = arith.constant 0 : index
    %c0_60 = arith.constant 0 : index
    %62 = vector.load %arg4[%c0_58, %c0_59, %c0_60] : memref<3x128x128xbf16, #tpu.memory_space<vmem>>, vector<1x128x128xbf16>
    %63 = vector.shape_cast %62 : vector<1x128x128xbf16> to vector<128x128xbf16>
    %cst_61 = arith.constant dense<0.000000e+00> : vector<32x128xf32>
    %64 = tpu.matmul %61, %63, %cst_61 {dimension_numbers = #tpu.dot_dimension_numbers<[1], [0], [0], [1], [0, 0, 1, 1], [], []>} : vector<32x128xbf16>, vector<128x128xbf16>, vector<32x128xf32> -> vector<32x128xf32>
    %c0_62 = arith.constant 0 : index
    %c1_63 = arith.constant 1 : index
    %c0_64 = arith.constant 0 : index
    %65 = vector.load %arg10[%c0_62, %c1_63, %c0_64] : memref<2x18x128xbf16, #tpu.memory_space<vmem>>, vector<2x16x128xbf16>
    %66 = vector.shape_cast %65 : vector<2x16x128xbf16> to vector<32x128xbf16>
    %c1_65 = arith.constant 1 : index
    %c0_66 = arith.constant 0 : index
    %c0_67 = arith.constant 0 : index
    %67 = vector.load %arg4[%c1_65, %c0_66, %c0_67] : memref<3x128x128xbf16, #tpu.memory_space<vmem>>, vector<1x128x128xbf16>
    %68 = vector.shape_cast %67 : vector<1x128x128xbf16> to vector<128x128xbf16>
    %cst_68 = arith.constant dense<0.000000e+00> : vector<32x128xf32>
    %69 = tpu.matmul %66, %68, %cst_68 {dimension_numbers = #tpu.dot_dimension_numbers<[1], [0], [0], [1], [0, 0, 1, 1], [], []>} : vector<32x128xbf16>, vector<128x128xbf16>, vector<32x128xf32> -> vector<32x128xf32>
    %70 = arith.addf %64, %69 : vector<32x128xf32>
    %c0_69 = arith.constant 0 : index
    %c2_70 = arith.constant 2 : index
    %c0_71 = arith.constant 0 : index
    %71 = vector.load %arg10[%c0_69, %c2_70, %c0_71] : memref<2x18x128xbf16, #tpu.memory_space<vmem>>, vector<2x16x128xbf16>
    %72 = vector.shape_cast %71 : vector<2x16x128xbf16> to vector<32x128xbf16>
    %c2_72 = arith.constant 2 : index
    %c0_73 = arith.constant 0 : index
    %c0_74 = arith.constant 0 : index
    %73 = vector.load %arg4[%c2_72, %c0_73, %c0_74] : memref<3x128x128xbf16, #tpu.memory_space<vmem>>, vector<1x128x128xbf16>
    %74 = vector.shape_cast %73 : vector<1x128x128xbf16> to vector<128x128xbf16>
    %cst_75 = arith.constant dense<0.000000e+00> : vector<32x128xf32>
    %75 = tpu.matmul %72, %74, %cst_75 {dimension_numbers = #tpu.dot_dimension_numbers<[1], [0], [0], [1], [0, 0, 1, 1], [], []>} : vector<32x128xbf16>, vector<128x128xbf16>, vector<32x128xf32> -> vector<32x128xf32>
    %76 = arith.addf %70, %75 : vector<32x128xf32>
    %c0_76 = arith.constant 0 : index
    %c0_77 = arith.constant 0 : index
    %77 = vector.load %arg7[%c0_76, %c0_77] : memref<128x8xf32, #tpu.memory_space<vmem>>, vector<128x8xf32>
    %cst_78 = arith.constant dense<0.000000e+00> : vector<32x8xf32>
    %78 = tpu.matmul %76, %77, %cst_78 {dimension_numbers = #tpu.dot_dimension_numbers<[1], [0], [0], [1], [0, 0, 1, 1], [], []>} : vector<32x128xf32>, vector<128x8xf32>, vector<32x8xf32> -> vector<32x8xf32>
    %cst_79 = arith.constant dense<0.000000e+00> : vector<8xf32>
    %79 = vector.multi_reduction <add>, %78, %cst_79 [0] : vector<32x8xf32> to vector<8xf32>
    %80 = vector.shape_cast %79 : vector<8xf32> to vector<1x8xf32>
    %81 = arith.mulf %76, %76 : vector<32x128xf32>
    %c0_80 = arith.constant 0 : index
    %c0_81 = arith.constant 0 : index
    %82 = vector.load %arg7[%c0_80, %c0_81] : memref<128x8xf32, #tpu.memory_space<vmem>>, vector<128x8xf32>
    %cst_82 = arith.constant dense<0.000000e+00> : vector<32x8xf32>
    %83 = tpu.matmul %81, %82, %cst_82 {dimension_numbers = #tpu.dot_dimension_numbers<[1], [0], [0], [1], [0, 0, 1, 1], [], []>} : vector<32x128xf32>, vector<128x8xf32>, vector<32x8xf32> -> vector<32x8xf32>
    %cst_83 = arith.constant dense<0.000000e+00> : vector<8xf32>
    %84 = vector.multi_reduction <add>, %83, %cst_83 [0] : vector<32x8xf32> to vector<8xf32>
    %85 = vector.shape_cast %84 : vector<8xf32> to vector<1x8xf32>
    %cst_84 = arith.constant 0.001953125 : f32
    %86 = vector.broadcast %cst_84 : f32 to vector<1x8xf32>
    %87 = arith.mulf %80, %86 : vector<1x8xf32>
    %cst_85 = arith.constant 0.001953125 : f32
    %88 = vector.broadcast %cst_85 : f32 to vector<1x8xf32>
    %89 = arith.mulf %85, %88 : vector<1x8xf32>
    %90 = arith.mulf %87, %87 : vector<1x8xf32>
    %91 = arith.subf %89, %90 : vector<1x8xf32>
    %c0_86 = arith.constant 0 : index
    %c0_87 = arith.constant 0 : index
    %92 = vector.load %arg5[%c0_86, %c0_87] : memref<1x8xf32, #tpu.memory_space<vmem>>, vector<1x8xf32>
    %cst_88 = arith.constant 9.99999974E-6 : f32
    %93 = vector.broadcast %cst_88 : f32 to vector<1x8xf32>
    %94 = arith.addf %91, %93 : vector<1x8xf32>
    %95 = math.rsqrt %94 : vector<1x8xf32>
    %96 = arith.mulf %92, %95 : vector<1x8xf32>
    %c0_89 = arith.constant 0 : index
    %c0_90 = arith.constant 0 : index
    %97 = vector.load %arg6[%c0_89, %c0_90] : memref<1x8xf32, #tpu.memory_space<vmem>>, vector<1x8xf32>
    %98 = arith.mulf %87, %96 : vector<1x8xf32>
    %99 = arith.subf %97, %98 : vector<1x8xf32>
    %c0_91 = arith.constant 0 : index
    %c0_92 = arith.constant 0 : index
    %100 = vector.load %arg8[%c0_91, %c0_92] : memref<8x128xf32, #tpu.memory_space<vmem>>, vector<8x128xf32>
    %cst_93 = arith.constant dense<0.000000e+00> : vector<1x128xf32>
    %101 = tpu.matmul %96, %100, %cst_93 {dimension_numbers = #tpu.dot_dimension_numbers<[1], [0], [0], [1], [0, 0, 1, 1], [], []>} : vector<1x8xf32>, vector<8x128xf32>, vector<1x128xf32> -> vector<1x128xf32>
    %c0_94 = arith.constant 0 : index
    %c0_95 = arith.constant 0 : index
    %102 = vector.load %arg8[%c0_94, %c0_95] : memref<8x128xf32, #tpu.memory_space<vmem>>, vector<8x128xf32>
    %cst_96 = arith.constant dense<0.000000e+00> : vector<1x128xf32>
    %103 = tpu.matmul %99, %102, %cst_96 {dimension_numbers = #tpu.dot_dimension_numbers<[1], [0], [0], [1], [0, 0, 1, 1], [], []>} : vector<1x8xf32>, vector<8x128xf32>, vector<1x128xf32> -> vector<1x128xf32>
    %104 = vector.broadcast %101 : vector<1x128xf32> to vector<32x128xf32>
    %105 = arith.mulf %76, %104 : vector<32x128xf32>
    %106 = vector.broadcast %103 : vector<1x128xf32> to vector<32x128xf32>
    %107 = arith.addf %105, %106 : vector<32x128xf32>
    %c0_97 = arith.constant 0 : index
    %c0_98 = arith.constant 0 : index
    %c0_99 = arith.constant 0 : index
    %108 = vector.load %arg0[%c0_97, %c0_98, %c0_99] : memref<2x16x128xf32, #tpu.memory_space<vmem>>, vector<2x16x128xf32>
    %109 = vector.shape_cast %108 : vector<2x16x128xf32> to vector<32x128xf32>
    %110 = arith.addf %107, %109 : vector<32x128xf32>
    %cst_100 = arith.constant 0.000000e+00 : f32
    %111 = vector.broadcast %cst_100 : f32 to vector<32x128xf32>
    %112 = arith.maximumf %110, %111 : vector<32x128xf32>
    %c0_101 = arith.constant 0 : index
    %c0_102 = arith.constant 0 : index
    %113 = vector.load %arg9[%c0_101, %c0_102] : memref<32x128xf32, #tpu.memory_space<vmem>>, vector<32x128xf32>
    tpu.vector_store %arg9[%c0_101, %c0_102], %112 {strides = array<i32>} : memref<32x128xf32, #tpu.memory_space<vmem>>, vector<32x128xf32>,
    return
  }
}

</mosaic_0001>

<llo_original>
// kernel: tpu_custom_call.1
$region0: #{tpu_custom_call.1}
  #allocation0 [shape = 'u32[]', space=smem, size = 0x4, offset = 0x4, fixed_abs, tag = 'smem constant byte address 0x4 - core index']
  #allocation1 [shape = 'u32[144,128]{1,0:T(1,128)}', space=vmem, size = 0x12000, scoped, tag = 'internal scratch']
  #allocation2 [shape = 'bf16[2,18,128]{2,1,0:T(8,128)(2,1)}', space=vmem, size = 0x3000, scoped, tag = 'scratch operand']
  %s0 = inlined_call_operand.vmem [shape: f32[2,16,128], index: 0, kind: input, shape index: {}]
  %s1 = inlined_call_operand.hbm [shape: bf16[3,128,128], index: 1, kind: input, shape index: {}]
  %s2 = inlined_call_operand.vmem [shape: f32[1,8], index: 2, kind: input, shape index: {}]
  %s3 = inlined_call_operand.vmem [shape: f32[1,8], index: 3, kind: input, shape index: {}]
  %s4 = inlined_call_operand.hbm [shape: bf16[3,128,128], index: 4, kind: input, shape index: {}]
  %s5 = inlined_call_operand.vmem [shape: f32[1,8], index: 5, kind: input, shape index: {}]
  %s6 = inlined_call_operand.vmem [shape: f32[1,8], index: 6, kind: input, shape index: {}]
  %s7 = inlined_call_operand.vmem [shape: f32[128,8], index: 7, kind: input, shape index: {}]
  %s8 = inlined_call_operand.vmem [shape: f32[8,128], index: 8, kind: input, shape index: {}]
  %s9 = inlined_call_operand.hbm [shape: f32[32,128], index: 9, kind: output, shape index: {}]
  %s10 = sld [smem:[#allocation0]]
  $region54: #{tpu_custom_call.1} parent=0
    _
  %s12 = ssub.s32 1, %s10
  %s13 = scalar_select 0, %s12, %s10
  $region1: #{tpu_custom_call.1} parent=0
    #allocation3 [shape = 'u8[98304]{0}', space=vmem, size = 0x18000, scoped, tag = 'input window, operand 1, single buffered']
    #allocation4 [shape = 's32[1]{0}', space=sflag, size = 0x4, scoped, tag = 'scoped memory for tpu_custom_call.1']
    #allocation5 [shape = 's32[1]{0}', space=sflag, size = 0x4, scoped, tag = 'scoped memory for tpu_custom_call.1']
    #allocation6 [shape = 'u8[98304]{0}', space=vmem, size = 0x18000, scoped, tag = 'input window, operand 4, single buffered']
    #allocation7 [shape = 's32[1]{0}', space=sflag, size = 0x4, scoped, tag = 'scoped memory for tpu_custom_call.1']
    #allocation8 [shape = 'u8[16384]{0}', space=vmem, size = 0x4000, scoped, tag = 'output window, operand 0, single buffered']
    %14 = vsyncpa [#allocation4], 0
    %15 = vsyncpa [#allocation7], 0
    %16 = vsyncpa [#allocation5], 0
    // Predicated region
    $region2: #{tpu_custom_call.1} parent=1 // pred_check
      _
    $region3: #{tpu_custom_call.1} parent=1 // pred_check_branch
      %18 = sbr.rel (0) target = $region5
    $region4: #{tpu_custom_call.1} parent=1 // pred_region
      _
    $region5: #{tpu_custom_call.1} parent=1 // pred_fallthru
      _
    // Predicated region
    $region6: #{tpu_custom_call.1} parent=1 // pred_check
      _
    $region7: #{tpu_custom_call.1} parent=1 // pred_check_branch
      %20 = sbr.rel (0) target = $region9
    $region8: #{tpu_custom_call.1} parent=1 // pred_region
      %s22 = ssub.s32 3072, 3072
      %23 = vsyncadd [#allocation4], %s22
      %s24 = sshll.u32 [#allocation3], 4
      %s25 = int_to_ptr.vmem [resolvable:$true] %s24
      %30 = dma.hbm_to_vmem [thread:$0]  %s1, 3072, %s25, [#allocation4], 64, 64, 4
    $region9: #{tpu_custom_call.1} parent=1 // pred_fallthru
      _
    // Predicated region
    $region10: #{tpu_custom_call.1} parent=1 // pred_check
      _
    $region11: #{tpu_custom_call.1} parent=1 // pred_check_branch
      %32 = sbr.rel (0) target = $region13
    $region12: #{tpu_custom_call.1} parent=1 // pred_region
      _
    $region13: #{tpu_custom_call.1} parent=1 // pred_fallthru
      _
    // Predicated region
    $region14: #{tpu_custom_call.1} parent=1 // pred_check
      _
    $region15: #{tpu_custom_call.1} parent=1 // pred_check_branch
      %34 = sbr.rel (0) target = $region17
    $region16: #{tpu_custom_call.1} parent=1 // pred_region
      _
    $region17: #{tpu_custom_call.1} parent=1 // pred_fallthru
      _
    // Predicated region
    $region18: #{tpu_custom_call.1} parent=1 // pred_check
      _
    $region19: #{tpu_custom_call.1} parent=1 // pred_check_branch
      %36 = sbr.rel (0) target = $region21
    $region20: #{tpu_custom_call.1} parent=1 // pred_region
      %s38 = ssub.s32 3072, 3072
      %39 = vsyncadd [#allocation7], %s38
      %s40 = sshll.u32 [#allocation6], 4
      %s41 = int_to_ptr.vmem [resolvable:$true] %s40
      %46 = dma.hbm_to_vmem [thread:$0]  %s4, 3072, %s41, [#allocation7], 64, 64, 4
    $region21: #{tpu_custom_call.1} parent=1 // pred_fallthru
      _
    // Predicated region
    $region22: #{tpu_custom_call.1} parent=1 // pred_check
      _
    $region23: #{tpu_custom_call.1} parent=1 // pred_check_branch
      %48 = sbr.rel (0) target = $region25
    $region24: #{tpu_custom_call.1} parent=1 // pred_region
      _
    $region25: #{tpu_custom_call.1} parent=1 // pred_fallthru
      _
    // Predicated region
    $region26: #{tpu_custom_call.1} parent=1 // pred_check
      _
    $region27: #{tpu_custom_call.1} parent=1 // pred_check_branch
      %50 = sbr.rel (0) target = $region29
    $region28: #{tpu_custom_call.1} parent=1 // pred_region
      _
    $region29: #{tpu_custom_call.1} parent=1 // pred_fallthru
      _
    // Predicated region
    $region30: #{tpu_custom_call.1} parent=1 // pred_check
      _
    $region31: #{tpu_custom_call.1} parent=1 // pred_check_branch
      %52 = sbr.rel (0) target = $region33
    $region32: #{tpu_custom_call.1} parent=1 // pred_region
      _
    $region33: #{tpu_custom_call.1} parent=1 // pred_fallthru
      _
    // Predicated region
    $region34: #{tpu_custom_call.1} parent=1 // pred_check
      _
    $region35: #{tpu_custom_call.1} parent=1 // pred_check_branch
      %54 = sbr.rel (0) target = $region37
    $region36: #{tpu_custom_call.1} parent=1 // pred_region
      _
    $region37: #{tpu_custom_call.1} parent=1 // pred_fallthru
      _
    // Predicated region
    $region38: #{tpu_custom_call.1} parent=1 // pred_check
      _
    $region39: #{tpu_custom_call.1} parent=1 // pred_check_branch
      %56 = sbr.rel (0) target = $region41
    $region40: #{tpu_custom_call.1} parent=1 // pred_region
      %57 = dma.done [#allocation4], 3072
    $region41: #{tpu_custom_call.1} parent=1 // pred_fallthru
      _
    // Predicated region
    $region42: #{tpu_custom_call.1} parent=1 // pred_check
      _
    $region43: #{tpu_custom_call.1} parent=1 // pred_check_branch
      %59 = sbr.rel (0) target = $region45
    $region44: #{tpu_custom_call.1} parent=1 // pred_region
      %60 = dma.done [#allocation7], 3072
    $region45: #{tpu_custom_call.1} parent=1 // pred_fallthru
      _
    %vm62 = vcmask 1040384
    %vm63 = vsmask.f32 256
    %vm64 = vmand %vm62, %vm63
    %v65 = vld [vmem:[#allocation2] sm:$0x1]
    %v66 = vsel %vm64, 0, %v65
    %67 = vst [vmem:[#allocation2] sm:$0x1] %v66
    %v68 = vld [vmem:[#allocation2 + $0xc] sm:$0x1]
    %v69 = vsel %vm64, 0, %v68
    %70 = vst [vmem:[#allocation2 + $0xc] sm:$0x1] %v69
    %vm71 = vsmask.f32 7938
    %vm72 = vmand %vm62, %vm71
    %v73 = vld [vmem:[#allocation2 + $0x8] sm:$0x1]
    %v74 = vsel %vm72, 0, %v73
    %75 = vst [vmem:[#allocation2 + $0x8] sm:$0x1] %v74
    %v76 = vld [vmem:[#allocation2 + $0x14] sm:$0x1]
    %v77 = vsel %vm72, 0, %v76
    %78 = vst [vmem:[#allocation2 + $0x14] sm:$0x1] %v77
    %v79 = vld [vmem:[%s0] sm:$0xff]
    %v80 = vld [vmem:[%s0 + $0x8] sm:$0xff]
    %v81 = vld [vmem:[%s0 + $0x10] sm:$0xff]
    %v82 = vld [vmem:[%s0 + $0x18] sm:$0xff]
    %v83 = vpack.c.bf16 %v80, %v79
    %v84 = vpack.c.bf16 %v82, %v81
    %v87 = vunpack.c.l.b16 %v83
    %v88 = vunpack.c.h.b16 %v83
    %v89 = vunpack.c.l.b16 %v84
    %v90 = vunpack.c.h.b16 %v84
    %v91 = vpack.c.b16 %v87, %v87
    %v92 = vpack.c.b16 %v88, %v88
    %v93 = vpack.c.b16 %v89, %v89
    %v94 = vpack.c.b16 %v90, %v90
    %vm95 = vsmask.f32 4368
    %vm96 = vmor %vm63, %vm95
    %v98 = vshrl.u32 %v91, 16
    %v100 = vrot.slane %v98, 7
    %v101 = vshll.u32 %v91, 16
    %v103 = vor.u32 %v100, %v101
    %v104 = vrot.slane %v100, 4
    %v106 = vshrl.u32 %v92, 16
    %v108 = vrot.slane %v106, 7
    %v109 = vshll.u32 %v92, 16
    %v111 = vor.u32 %v108, %v109
    %v112 = vsel %vm96, %v104, %v111
    %v113 = vrot.slane %v108, 4
    %v115 = vshrl.u32 %v93, 16
    %v117 = vrot.slane %v115, 7
    %v118 = vshll.u32 %v93, 16
    %v120 = vor.u32 %v117, %v118
    %v121 = vrot.slane %v117, 4
    %v123 = vshrl.u32 %v94, 16
    %v125 = vrot.slane %v123, 7
    %v126 = vshll.u32 %v94, 16
    %v128 = vor.u32 %v125, %v126
    %v129 = vsel %vm96, %v121, %v128
    %v130 = vrot.slane %v125, 4
    %vm137 = vcmask 1043456
    %vm138 = vmand %vm137, %vm71
    %v139 = vld [vmem:[#allocation2] sm:$0xf]
    %v140 = vsel %vm138, %v103, %v139
    %141 = vst [vmem:[#allocation2] sm:$0xf] %v140
    %142 = vst [vmem:[#allocation2 + $0x4] sm:$0xf] %v112
    %v143 = vld [vmem:[#allocation2 + $0x8] sm:$0x1]
    %v144 = vsel %vm64, %v113, %v143
    %145 = vst [vmem:[#allocation2 + $0x8] sm:$0x1] %v144
    %v146 = vld [vmem:[#allocation2 + $0xc] sm:$0xf]
    %v147 = vsel %vm138, %v120, %v146
    %148 = vst [vmem:[#allocation2 + $0xc] sm:$0xf] %v147
    %149 = vst [vmem:[#allocation2 + $0x10] sm:$0xf] %v129
    %v150 = vld [vmem:[#allocation2 + $0x14] sm:$0x1]
    %v151 = vsel %vm64, %v130, %v150
    %152 = vst [vmem:[#allocation2 + $0x14] sm:$0x1] %v151
    %v153 = vld [vmem:[#allocation2] sm:$0xf]
    %v154 = vld [vmem:[#allocation2 + $0x4] sm:$0xf]
    %v155 = vld [vmem:[#allocation2 + $0xc] sm:$0xf]
    %v156 = vld [vmem:[#allocation2 + $0x10] sm:$0xf]
    %v157 = vld [vmem:[#allocation3] sm:$0xf]
    %v158 = vld [vmem:[#allocation3 + $0x4] sm:$0xf]
    %v159 = vld [vmem:[#allocation3 + $0x8] sm:$0xf]
    %v160 = vld [vmem:[#allocation3 + $0xc] sm:$0xf]
    %v161 = vld [vmem:[#allocation3 + $0x10] sm:$0xf]
    %v162 = vld [vmem:[#allocation3 + $0x14] sm:$0xf]
    %v163 = vld [vmem:[#allocation3 + $0x18] sm:$0xf]
    %v164 = vld [vmem:[#allocation3 + $0x1c] sm:$0xf]
    %v165 = vld [vmem:[#allocation3 + $0x20] sm:$0xf]
    %v166 = vld [vmem:[#allocation3 + $0x24] sm:$0xf]
    %v167 = vld [vmem:[#allocation3 + $0x28] sm:$0xf]
    %v168 = vld [vmem:[#allocation3 + $0x2c] sm:$0xf]
    %v169 = vld [vmem:[#allocation3 + $0x30] sm:$0xf]
    %v170 = vld [vmem:[#allocation3 + $0x34] sm:$0xf]
    %v171 = vld [vmem:[#allocation3 + $0x38] sm:$0xf]
    %v172 = vld [vmem:[#allocation3 + $0x3c] sm:$0xf]
    %v173 = vld [vmem:[#allocation2 + $0x8] sm:$0x1]
    %v174 = vld [vmem:[#allocation2 + $0x14] sm:$0x1]
    %vm175 = vsmask.f32 3328
    %vm176 = vsmask.f32 7440
    %vm177 = vmor %vm175, %vm176
    %v179 = vshrl.u32 %v153, 16
    %v181 = vrot.slane %v179, 4
    %v182 = vshll.u32 %v153, 16
    %v184 = vrot.slane %v182, 5
    %v185 = vor.u32 %v181, %v184
    %v186 = vrot.slane %v185, 4
    %v188 = vshll.u32 %v154, 16
    %v190 = vrot.slane %v188, 5
    %v191 = vsel %vm177, %v186, %v190
    %v192 = vshrl.u32 %v154, 16
    %v194 = vrot.slane %v192, 4
    %v195 = vor.u32 %v194, %v190
    %v196 = vrot.slane %v195, 4
    %v198 = vshll.u32 %v173, 16
    %v200 = vrot.slane %v198, 5
    %v201 = vsel %vm177, %v196, %v200
    %v203 = vshrl.u32 %v155, 16
    %v205 = vrot.slane %v203, 4
    %v206 = vshll.u32 %v155, 16
    %v208 = vrot.slane %v206, 5
    %v209 = vor.u32 %v205, %v208
    %v210 = vrot.slane %v209, 4
    %v212 = vshll.u32 %v156, 16
    %v214 = vrot.slane %v212, 5
    %v215 = vsel %vm177, %v210, %v214
    %v216 = vshrl.u32 %v156, 16
    %v218 = vrot.slane %v216, 4
    %v219 = vor.u32 %v218, %v214
    %v220 = vrot.slane %v219, 4
    %v222 = vshll.u32 %v174, 16
    %v224 = vrot.slane %v222, 5
    %v225 = vsel %vm177, %v220, %v224
    %s226 = scalar_lea.vmem [#allocation3], 64
    %v227 = vld [vmem:[%s226] sm:$0xf]
    %v228 = vld [vmem:[%s226 + $0x4] sm:$0xf]
    %v229 = vld [vmem:[%s226 + $0x8] sm:$0xf]
    %v230 = vld [vmem:[%s226 + $0xc] sm:$0xf]
    %v231 = vld [vmem:[%s226 + $0x10] sm:$0xf]
    %v232 = vld [vmem:[%s226 + $0x14] sm:$0xf]
    %v233 = vld [vmem:[%s226 + $0x18] sm:$0xf]
    %v234 = vld [vmem:[%s226 + $0x1c] sm:$0xf]
    %v235 = vld [vmem:[%s226 + $0x20] sm:$0xf]
    %v236 = vld [vmem:[%s226 + $0x24] sm:$0xf]
    %v237 = vld [vmem:[%s226 + $0x28] sm:$0xf]
    %v238 = vld [vmem:[%s226 + $0x2c] sm:$0xf]
    %v239 = vld [vmem:[%s226 + $0x30] sm:$0xf]
    %v240 = vld [vmem:[%s226 + $0x34] sm:$0xf]
    %v241 = vld [vmem:[%s226 + $0x38] sm:$0xf]
    %v242 = vld [vmem:[%s226 + $0x3c] sm:$0xf]
    %v243 = vunpack.c.l.b16 %v191
    %v244 = vunpack.c.l.b16 %v201
    %v245 = vunpack.c.l.b16 %v215
    %v246 = vunpack.c.l.b16 %v225
    %v247 = vpack.c.b16 %v244, %v243
    %v248 = vpack.c.b16 %v246, %v245
    %v267 = vunpack.c.l.b16 %v227
    %v268 = vunpack.c.l.b16 %v228
    %v269 = vunpack.c.l.b16 %v229
    %v270 = vunpack.c.l.b16 %v230
    %v271 = vunpack.c.l.b16 %v231
    %v272 = vunpack.c.l.b16 %v232
    %v273 = vunpack.c.l.b16 %v233
    %v274 = vunpack.c.l.b16 %v234
    %v275 = vunpack.c.l.b16 %v235
    %v276 = vunpack.c.l.b16 %v236
    %v277 = vunpack.c.l.b16 %v237
    %v278 = vunpack.c.l.b16 %v238
    %v279 = vunpack.c.l.b16 %v239
    %v280 = vunpack.c.l.b16 %v240
    %v281 = vunpack.c.l.b16 %v241
    %v282 = vunpack.c.l.b16 %v242
    %v283 = vpack.c.b16 %v268, %v267
    %v284 = vpack.c.b16 %v270, %v269
    %v285 = vpack.c.b16 %v272, %v271
    %v286 = vpack.c.b16 %v274, %v273
    %v287 = vpack.c.b16 %v276, %v275
    %v288 = vpack.c.b16 %v278, %v277
    %v289 = vpack.c.b16 %v280, %v279
    %v290 = vpack.c.b16 %v282, %v281
    %299 = vmatprep.subr.bf16.mxu0 0
    %300 = vmatpush1.bf16.msra.mxu0 %v290
    %301 = vmatprep.subr.bf16.mxu0 0
    %302 = vmatpush1.bf16.msra.mxu0 %v289
    %303 = vmatprep.subr.bf16.mxu0 0
    %304 = vmatpush1.bf16.msra.mxu0 %v288
    %305 = vmatprep.subr.bf16.mxu0 0
    %306 = vmatpush1.bf16.msra.mxu0 %v287
    %307 = vmatprep.subr.bf16.mxu0 0
    %308 = vmatpush1.bf16.msra.mxu0 %v286
    %309 = vmatprep.subr.bf16.mxu0 0
    %310 = vmatpush1.bf16.msra.mxu0 %v285
    %311 = vmatprep.subr.bf16.mxu0 0
    %312 = vmatpush1.bf16.msra.mxu0 %v284
    %313 = vmatprep.subr.bf16.mxu0 0
    %314 = vmatpush1.bf16.msra.mxu0 %v283
    %315 = vmatprep.subr.bf16.mxu0 0
    %316 = vmatpush2.bf16.msra.mxu0 0
    %317 = vmatprep.subr.bf16.mxu0 0
    %318 = vmatpush2.bf16.msra.mxu0 0
    %319 = vmatprep.subr.bf16.mxu0 0
    %320 = vmatpush2.bf16.msra.mxu0 0
    %321 = vmatprep.subr.bf16.mxu0 0
    %322 = vmatpush2.bf16.msra.mxu0 0
    %323 = vmatprep.subr.bf16.mxu0 0
    %324 = vmatpush2.bf16.msra.mxu0 0
    %325 = vmatprep.subr.bf16.mxu0 0
    %326 = vmatpush2.bf16.msra.mxu0 0
    %327 = vmatprep.subr.bf16.mxu0 0
    %328 = vmatpush2.bf16.msra.mxu0 0
    %329 = vmatprep.subr.bf16.mxu0 0
    %330 = vmatpush2.bf16.msra.mxu0 0
    %331 = vmatprep.mubr.bf16.mxu0 0
    %332 = vmatmul.mubr.bf16.gmra.mxu0 %v247
    %v333 = vpop.f32.mrf.mxu0
    %v334 = vadd.f32 0.0, %v333
    %v335 = vpop.f32.mrf.mxu0
    %v336 = vpop.f32.mrf.mxu0
    %v337 = vadd.f32 0.0, %v336
    %v338 = vpop.f32.mrf.mxu0
    %339 = vmatprep.mubr.bf16.mxu0 0
    %340 = vmatmul.mubr.bf16.gmra.mxu0 %v248
    %v341 = vpop.f32.mrf.mxu0
    %v342 = vadd.f32 0.0, %v341
    %v343 = vpop.f32.mrf.mxu0
    %v344 = vpop.f32.mrf.mxu0
    %v345 = vadd.f32 0.0, %v344
    %v346 = vpop.f32.mrf.mxu0
    %347 = vdwg.mxu0
    %v352 = vunpack.c.l.b16 %v153
    %v353 = vunpack.c.l.b16 %v154
    %v354 = vunpack.c.l.b16 %v155
    %v355 = vunpack.c.l.b16 %v156
    %v356 = vpack.c.b16 %v353, %v352
    %v357 = vpack.c.b16 %v355, %v354
    %v376 = vunpack.c.l.b16 %v157
    %v377 = vunpack.c.l.b16 %v158
    %v378 = vunpack.c.l.b16 %v159
    %v379 = vunpack.c.l.b16 %v160
    %v380 = vunpack.c.l.b16 %v161
    %v381 = vunpack.c.l.b16 %v162
    %v382 = vunpack.c.l.b16 %v163
    %v383 = vunpack.c.l.b16 %v164
    %v384 = vunpack.c.l.b16 %v165
    %v385 = vunpack.c.l.b16 %v166
    %v386 = vunpack.c.l.b16 %v167
    %v387 = vunpack.c.l.b16 %v168
    %v388 = vunpack.c.l.b16 %v169
    %v389 = vunpack.c.l.b16 %v170
    %v390 = vunpack.c.l.b16 %v171
    %v391 = vunpack.c.l.b16 %v172
    %v392 = vpack.c.b16 %v377, %v376
    %v393 = vpack.c.b16 %v379, %v378
    %v394 = vpack.c.b16 %v381, %v380
    %v395 = vpack.c.b16 %v383, %v382
    %v396 = vpack.c.b16 %v385, %v384
    %v397 = vpack.c.b16 %v387, %v386
    %v398 = vpack.c.b16 %v389, %v388
    %v399 = vpack.c.b16 %v391, %v390
    %408 = vmatprep.subr.bf16.mxu0 0
    %409 = vmatpush1.bf16.msra.mxu0 %v399
    %410 = vmatprep.subr.bf16.mxu0 0
    %411 = vmatpush1.bf16.msra.mxu0 %v398
    %412 = vmatprep.subr.bf16.mxu0 0
    %413 = vmatpush1.bf16.msra.mxu0 %v397
    %414 = vmatprep.subr.bf16.mxu0 0
    %415 = vmatpush1.bf16.msra.mxu0 %v396
    %416 = vmatprep.subr.bf16.mxu0 0
    %417 = vmatpush1.bf16.msra.mxu0 %v395
    %418 = vmatprep.subr.bf16.mxu0 0
    %419 = vmatpush1.bf16.msra.mxu0 %v394
    %420 = vmatprep.subr.bf16.mxu0 0
    %421 = vmatpush1.bf16.msra.mxu0 %v393
    %422 = vmatprep.subr.bf16.mxu0 0
    %423 = vmatpush1.bf16.msra.mxu0 %v392
    %424 = vmatprep.subr.bf16.mxu0 0
    %425 = vmatpush2.bf16.msra.mxu0 0
    %426 = vmatprep.subr.bf16.mxu0 0
    %427 = vmatpush2.bf16.msra.mxu0 0
    %428 = vmatprep.subr.bf16.mxu0 0
    %429 = vmatpush2.bf16.msra.mxu0 0
    %430 = vmatprep.subr.bf16.mxu0 0
    %431 = vmatpush2.bf16.msra.mxu0 0
    %432 = vmatprep.subr.bf16.mxu0 0
    %433 = vmatpush2.bf16.msra.mxu0 0
    %434 = vmatprep.subr.bf16.mxu0 0
    %435 = vmatpush2.bf16.msra.mxu0 0
    %436 = vmatprep.subr.bf16.mxu0 0
    %437 = vmatpush2.bf16.msra.mxu0 0
    %438 = vmatprep.subr.bf16.mxu0 0
    %439 = vmatpush2.bf16.msra.mxu0 0
    %440 = vmatprep.mubr.bf16.mxu0 0
    %441 = vmatmul.mubr.bf16.gmra.mxu0 %v356
    %v442 = vpop.f32.mrf.mxu0
    %v443 = vadd.f32 %v334, %v442
    %v444 = vpop.f32.mrf.mxu0
    %v445 = vpop.f32.mrf.mxu0
    %v446 = vadd.f32 %v337, %v445
    %v447 = vpop.f32.mrf.mxu0
    %448 = vmatprep.mubr.bf16.mxu0 0
    %449 = vmatmul.mubr.bf16.gmra.mxu0 %v357
    %v450 = vpop.f32.mrf.mxu0
    %v451 = vadd.f32 %v342, %v450
    %v452 = vpop.f32.mrf.mxu0
    %v453 = vpop.f32.mrf.mxu0
    %v454 = vadd.f32 %v345, %v453
    %v455 = vpop.f32.mrf.mxu0
    %456 = vdwg.mxu0
    %v457 = vld [vmem:[#allocation2] sm:$0xe]
    %v458 = vld [vmem:[#allocation2 + $0xc] sm:$0xe]
    %vm463 = vcmask 1042432
    %vm464 = vcmask 1046532
    %vm465 = vmor %vm463, %vm464
    %v466 = vrot.slane %v457, 5
    %v467 = vrot.slane %v466, 4
    %v468 = vrot.slane %v154, 5
    %v469 = vsel %vm465, %v467, %v468
    %v470 = vrot.slane %v468, 4
    %v471 = vrot.slane %v173, 5
    %v472 = vsel %vm465, %v470, %v471
    %v473 = vrot.slane %v458, 5
    %v474 = vrot.slane %v473, 4
    %v475 = vrot.slane %v156, 5
    %v476 = vsel %vm465, %v474, %v475
    %v477 = vrot.slane %v475, 4
    %v478 = vrot.slane %v174, 5
    %v479 = vsel %vm465, %v477, %v478
    %s480 = scalar_lea.vmem [#allocation3], 128
    %v481 = vld [vmem:[%s480] sm:$0xf]
    %v482 = vld [vmem:[%s480 + $0x4] sm:$0xf]
    %v483 = vld [vmem:[%s480 + $0x8] sm:$0xf]
    %v484 = vld [vmem:[%s480 + $0xc] sm:$0xf]
    %v485 = vld [vmem:[%s480 + $0x10] sm:$0xf]
    %v486 = vld [vmem:[%s480 + $0x14] sm:$0xf]
    %v487 = vld [vmem:[%s480 + $0x18] sm:$0xf]
    %v488 = vld [vmem:[%s480 + $0x1c] sm:$0xf]
    %v489 = vld [vmem:[%s480 + $0x20] sm:$0xf]
    %v490 = vld [vmem:[%s480 + $0x24] sm:$0xf]
    %v491 = vld [vmem:[%s480 + $0x28] sm:$0xf]
    %v492 = vld [vmem:[%s480 + $0x2c] sm:$0xf]
    %v493 = vld [vmem:[%s480 + $0x30] sm:$0xf]
    %v494 = vld [vmem:[%s480 + $0x34] sm:$0xf]
    %v495 = vld [vmem:[%s480 + $0x38] sm:$0xf]
    %v496 = vld [vmem:[%s480 + $0x3c] sm:$0xf]
    %v497 = vunpack.c.l.b16 %v469
    %v498 = vunpack.c.l.b16 %v472
    %v499 = vunpack.c.l.b16 %v476
    %v500 = vunpack.c.l.b16 %v479
    %v501 = vpack.c.b16 %v498, %v497
    %v502 = vpack.c.b16 %v500, %v499
    %v521 = vunpack.c.l.b16 %v481
    %v522 = vunpack.c.l.b16 %v482
    %v523 = vunpack.c.l.b16 %v483
    %v524 = vunpack.c.l.b16 %v484
    %v525 = vunpack.c.l.b16 %v485
    %v526 = vunpack.c.l.b16 %v486
    %v527 = vunpack.c.l.b16 %v487
    %v528 = vunpack.c.l.b16 %v488
    %v529 = vunpack.c.l.b16 %v489
    %v530 = vunpack.c.l.b16 %v490
    %v531 = vunpack.c.l.b16 %v491
    %v532 = vunpack.c.l.b16 %v492
    %v533 = vunpack.c.l.b16 %v493
    %v534 = vunpack.c.l.b16 %v494
    %v535 = vunpack.c.l.b16 %v495
    %v536 = vunpack.c.l.b16 %v496
    %v537 = vpack.c.b16 %v522, %v521
    %v538 = vpack.c.b16 %v524, %v523
    %v539 = vpack.c.b16 %v526, %v525
    %v540 = vpack.c.b16 %v528, %v527
    %v541 = vpack.c.b16 %v530, %v529
    %v542 = vpack.c.b16 %v532, %v531
    %v543 = vpack.c.b16 %v534, %v533
    %v544 = vpack.c.b16 %v536, %v535
    %553 = vmatprep.subr.bf16.mxu0 0
    %554 = vmatpush1.bf16.msra.mxu0 %v544
    %555 = vmatprep.subr.bf16.mxu0 0
    %556 = vmatpush1.bf16.msra.mxu0 %v543
    %557 = vmatprep.subr.bf16.mxu0 0
    %558 = vmatpush1.bf16.msra.mxu0 %v542
    %559 = vmatprep.subr.bf16.mxu0 0
    %560 = vmatpush1.bf16.msra.mxu0 %v541
    %561 = vmatprep.subr.bf16.mxu0 0
    %562 = vmatpush1.bf16.msra.mxu0 %v540
    %563 = vmatprep.subr.bf16.mxu0 0
    %564 = vmatpush1.bf16.msra.mxu0 %v539
    %565 = vmatprep.subr.bf16.mxu0 0
    %566 = vmatpush1.bf16.msra.mxu0 %v538
    %567 = vmatprep.subr.bf16.mxu0 0
    %568 = vmatpush1.bf16.msra.mxu0 %v537
    %569 = vmatprep.subr.bf16.mxu0 0
    %570 = vmatpush2.bf16.msra.mxu0 0
    %571 = vmatprep.subr.bf16.mxu0 0
    %572 = vmatpush2.bf16.msra.mxu0 0
    %573 = vmatprep.subr.bf16.mxu0 0
    %574 = vmatpush2.bf16.msra.mxu0 0
    %575 = vmatprep.subr.bf16.mxu0 0
    %576 = vmatpush2.bf16.msra.mxu0 0
    %577 = vmatprep.subr.bf16.mxu0 0
    %578 = vmatpush2.bf16.msra.mxu0 0
    %579 = vmatprep.subr.bf16.mxu0 0
    %580 = vmatpush2.bf16.msra.mxu0 0
    %581 = vmatprep.subr.bf16.mxu0 0
    %582 = vmatpush2.bf16.msra.mxu0 0
    %583 = vmatprep.subr.bf16.mxu0 0
    %584 = vmatpush2.bf16.msra.mxu0 0
    %585 = vmatprep.mubr.bf16.mxu0 0
    %586 = vmatmul.mubr.bf16.gmra.mxu0 %v501
    %v587 = vpop.f32.mrf.mxu0
    %v588 = vadd.f32 0.0, %v587
    %v589 = vpop.f32.mrf.mxu0
    %v590 = vpop.f32.mrf.mxu0
    %v591 = vadd.f32 0.0, %v590
    %v592 = vpop.f32.mrf.mxu0
    %593 = vmatprep.mubr.bf16.mxu0 0
    %594 = vmatmul.mubr.bf16.gmra.mxu0 %v502
    %v595 = vpop.f32.mrf.mxu0
    %v596 = vadd.f32 0.0, %v595
    %v597 = vpop.f32.mrf.mxu0
    %v598 = vpop.f32.mrf.mxu0
    %v599 = vadd.f32 0.0, %v598
    %v600 = vpop.f32.mrf.mxu0
    %601 = vdwg.mxu0
    %v602 = vadd.f32 %v443, %v588
    %v603 = vadd.f32 %v446, %v591
    %v604 = vadd.f32 %v451, %v596
    %v605 = vadd.f32 %v454, %v599
    %v606 = vld [vmem:[%s7] sm:$0xff]
    %v607 = vld [vmem:[%s7 + $0x8] sm:$0xff]
    %v608 = vld [vmem:[%s7 + $0x10] sm:$0xff]
    %v609 = vld [vmem:[%s7 + $0x18] sm:$0xff]
    %v610 = vld [vmem:[%s7 + $0x20] sm:$0xff]
    %v611 = vld [vmem:[%s7 + $0x28] sm:$0xff]
    %v612 = vld [vmem:[%s7 + $0x30] sm:$0xff]
    %v613 = vld [vmem:[%s7 + $0x38] sm:$0xff]
    %v614 = vld [vmem:[%s7 + $0x40] sm:$0xff]
    %v615 = vld [vmem:[%s7 + $0x48] sm:$0xff]
    %v616 = vld [vmem:[%s7 + $0x50] sm:$0xff]
    %v617 = vld [vmem:[%s7 + $0x58] sm:$0xff]
    %v618 = vld [vmem:[%s7 + $0x60] sm:$0xff]
    %v619 = vld [vmem:[%s7 + $0x68] sm:$0xff]
    %v620 = vld [vmem:[%s7 + $0x70] sm:$0xff]
    %v621 = vld [vmem:[%s7 + $0x78] sm:$0xff]
    %622 = vmatprep.subr.mxu0 0.0
    %623 = vmatpush1.msra.mxu0 %v621
    %624 = vmatprep.subr.mxu0 0.0
    %625 = vmatpush1.msra.mxu0 %v620
    %626 = vmatprep.subr.mxu0 0.0
    %627 = vmatpush1.msra.mxu0 %v619
    %628 = vmatprep.subr.mxu0 0.0
    %629 = vmatpush1.msra.mxu0 %v618
    %630 = vmatprep.subr.mxu0 0.0
    %631 = vmatpush1.msra.mxu0 %v617
    %632 = vmatprep.subr.mxu0 0.0
    %633 = vmatpush1.msra.mxu0 %v616
    %634 = vmatprep.subr.mxu0 0.0
    %635 = vmatpush1.msra.mxu0 %v615
    %636 = vmatprep.subr.mxu0 0.0
    %637 = vmatpush1.msra.mxu0 %v614
    %638 = vmatprep.subr.mxu0 0.0
    %639 = vmatpush1.msra.mxu0 %v613
    %640 = vmatprep.subr.mxu0 0.0
    %641 = vmatpush1.msra.mxu0 %v612
    %642 = vmatprep.subr.mxu0 0.0
    %643 = vmatpush1.msra.mxu0 %v611
    %644 = vmatprep.subr.mxu0 0.0
    %645 = vmatpush1.msra.mxu0 %v610
    %646 = vmatprep.subr.mxu0 0.0
    %647 = vmatpush1.msra.mxu0 %v609
    %648 = vmatprep.subr.mxu0 0.0
    %649 = vmatpush1.msra.mxu0 %v608
    %650 = vmatprep.subr.mxu0 0.0
    %651 = vmatpush1.msra.mxu0 %v607
    %652 = vmatprep.subr.mxu0 0.0
    %653 = vmatpush1.msra.mxu0 %v606
    %654 = vmatprep.subr.mxu0 0.0
    %655 = vmatpush2.msra.mxu0 0.0
    %656 = vmatprep.subr.mxu0 0.0
    %657 = vmatpush2.msra.mxu0 0.0
    %658 = vmatprep.subr.mxu0 0.0
    %659 = vmatpush2.msra.mxu0 0.0
    %660 = vmatprep.subr.mxu0 0.0
    %661 = vmatpush2.msra.mxu0 0.0
    %662 = vmatprep.subr.mxu0 0.0
    %663 = vmatpush2.msra.mxu0 0.0
    %664 = vmatprep.subr.mxu0 0.0
    %665 = vmatpush2.msra.mxu0 0.0
    %666 = vmatprep.subr.mxu0 0.0
    %667 = vmatpush2.msra.mxu0 0.0
    %668 = vmatprep.subr.mxu0 0.0
    %669 = vmatpush2.msra.mxu0 0.0
    %670 = vmatprep.subr.mxu0 0.0
    %671 = vmatpush2.msra.mxu0 0.0
    %672 = vmatprep.subr.mxu0 0.0
    %673 = vmatpush2.msra.mxu0 0.0
    %674 = vmatprep.subr.mxu0 0.0
    %675 = vmatpush2.msra.mxu0 0.0
    %676 = vmatprep.subr.mxu0 0.0
    %677 = vmatpush2.msra.mxu0 0.0
    %678 = vmatprep.subr.mxu0 0.0
    %679 = vmatpush2.msra.mxu0 0.0
    %680 = vmatprep.subr.mxu0 0.0
    %681 = vmatpush2.msra.mxu0 0.0
    %682 = vmatprep.subr.mxu0 0.0
    %683 = vmatpush2.msra.mxu0 0.0
    %684 = vmatprep.subr.mxu0 0.0
    %685 = vmatpush2.msra.mxu0 0.0
    %686 = vmatprep.mubr.f32.mxu0 0.0
    %687 = vmatmul.mubr.f32.gmra.mxu0 %v602
    %v688 = vpop.f32.mrf.mxu0
    %v689 = vadd.f32 0.0, %v688
    %v690 = vpop.f32.mrf.mxu0
    %691 = vmatprep.mubr.f32.mxu0 0.0
    %692 = vmatmul.mubr.f32.gmra.mxu0 %v603
    %v693 = vpop.f32.mrf.mxu0
    %v694 = vadd.f32 0.0, %v693
    %v695 = vpop.f32.mrf.mxu0
    %696 = vmatprep.mubr.f32.mxu0 0.0
    %697 = vmatmul.mubr.f32.gmra.mxu0 %v604
    %v698 = vpop.f32.mrf.mxu0
    %v699 = vadd.f32 0.0, %v698
    %v700 = vpop.f32.mrf.mxu0
    %701 = vmatprep.mubr.f32.mxu0 0.0
    %702 = vmatmul.mubr.f32.gmra.mxu0 %v605
    %v703 = vpop.f32.mrf.mxu0
    %v704 = vadd.f32 0.0, %v703
    %v705 = vpop.f32.mrf.mxu0
    %706 = vdwg.mxu0
    %vm707 = vcmask 64512
    %v708 = vsel %vm707, %v689, 0.0
    %v709 = vsel %vm707, %v694, 0.0
    %v710 = vadd.f32 %v708, %v709
    %v711 = vsel %vm707, %v699, 0.0
    %v712 = vadd.f32 %v710, %v711
    %v713 = vsel %vm707, %v704, 0.0
    %v714 = vadd.f32 %v712, %v713
    %v715 = vrot.slane %v714, 4
    %v716 = vadd.f32 %v714, %v715
    %v717 = vrot.slane %v716, 2
    %v718 = vadd.f32 %v716, %v717
    %v719 = vrot.slane %v718, 1
    %v720 = vadd.f32 %v718, %v719
    %v721 = vmul.f32 %v602, %v602
    %v722 = vmul.f32 %v603, %v603
    %v723 = vmul.f32 %v604, %v604
    %v724 = vmul.f32 %v605, %v605
    %725 = vmatprep.subr.mxu0 0.0
    %726 = vmatpush1.msra.mxu0 %v621
    %727 = vmatprep.subr.mxu0 0.0
    %728 = vmatpush1.msra.mxu0 %v620
    %729 = vmatprep.subr.mxu0 0.0
    %730 = vmatpush1.msra.mxu0 %v619
    %731 = vmatprep.subr.mxu0 0.0
    %732 = vmatpush1.msra.mxu0 %v618
    %733 = vmatprep.subr.mxu0 0.0
    %734 = vmatpush1.msra.mxu0 %v617
    %735 = vmatprep.subr.mxu0 0.0
    %736 = vmatpush1.msra.mxu0 %v616
    %737 = vmatprep.subr.mxu0 0.0
    %738 = vmatpush1.msra.mxu0 %v615
    %739 = vmatprep.subr.mxu0 0.0
    %740 = vmatpush1.msra.mxu0 %v614
    %741 = vmatprep.subr.mxu0 0.0
    %742 = vmatpush1.msra.mxu0 %v613
    %743 = vmatprep.subr.mxu0 0.0
    %744 = vmatpush1.msra.mxu0 %v612
    %745 = vmatprep.subr.mxu0 0.0
    %746 = vmatpush1.msra.mxu0 %v611
    %747 = vmatprep.subr.mxu0 0.0
    %748 = vmatpush1.msra.mxu0 %v610
    %749 = vmatprep.subr.mxu0 0.0
    %750 = vmatpush1.msra.mxu0 %v609
    %751 = vmatprep.subr.mxu0 0.0
    %752 = vmatpush1.msra.mxu0 %v608
    %753 = vmatprep.subr.mxu0 0.0
    %754 = vmatpush1.msra.mxu0 %v607
    %755 = vmatprep.subr.mxu0 0.0
    %756 = vmatpush1.msra.mxu0 %v606
    %757 = vmatprep.subr.mxu0 0.0
    %758 = vmatpush2.msra.mxu0 0.0
    %759 = vmatprep.subr.mxu0 0.0
    %760 = vmatpush2.msra.mxu0 0.0
    %761 = vmatprep.subr.mxu0 0.0
    %762 = vmatpush2.msra.mxu0 0.0
    %763 = vmatprep.subr.mxu0 0.0
    %764 = vmatpush2.msra.mxu0 0.0
    %765 = vmatprep.subr.mxu0 0.0
    %766 = vmatpush2.msra.mxu0 0.0
    %767 = vmatprep.subr.mxu0 0.0
    %768 = vmatpush2.msra.mxu0 0.0
    %769 = vmatprep.subr.mxu0 0.0
    %770 = vmatpush2.msra.mxu0 0.0
    %771 = vmatprep.subr.mxu0 0.0
    %772 = vmatpush2.msra.mxu0 0.0
    %773 = vmatprep.subr.mxu0 0.0
    %774 = vmatpush2.msra.mxu0 0.0
    %775 = vmatprep.subr.mxu0 0.0
    %776 = vmatpush2.msra.mxu0 0.0
    %777 = vmatprep.subr.mxu0 0.0
    %778 = vmatpush2.msra.mxu0 0.0
    %779 = vmatprep.subr.mxu0 0.0
    %780 = vmatpush2.msra.mxu0 0.0
    %781 = vmatprep.subr.mxu0 0.0
    %782 = vmatpush2.msra.mxu0 0.0
    %783 = vmatprep.subr.mxu0 0.0
    %784 = vmatpush2.msra.mxu0 0.0
    %785 = vmatprep.subr.mxu0 0.0
    %786 = vmatpush2.msra.mxu0 0.0
    %787 = vmatprep.subr.mxu0 0.0
    %788 = vmatpush2.msra.mxu0 0.0
    %789 = vmatprep.mubr.f32.mxu0 0.0
    %790 = vmatmul.mubr.f32.gmra.mxu0 %v721
    %v791 = vpop.f32.mrf.mxu0
    %v792 = vadd.f32 0.0, %v791
    %v793 = vpop.f32.mrf.mxu0
    %794 = vmatprep.mubr.f32.mxu0 0.0
    %795 = vmatmul.mubr.f32.gmra.mxu0 %v722
    %v796 = vpop.f32.mrf.mxu0
    %v797 = vadd.f32 0.0, %v796
    %v798 = vpop.f32.mrf.mxu0
    %799 = vmatprep.mubr.f32.mxu0 0.0
    %800 = vmatmul.mubr.f32.gmra.mxu0 %v723
    %v801 = vpop.f32.mrf.mxu0
    %v802 = vadd.f32 0.0, %v801
    %v803 = vpop.f32.mrf.mxu0
    %804 = vmatprep.mubr.f32.mxu0 0.0
    %805 = vmatmul.mubr.f32.gmra.mxu0 %v724
    %v806 = vpop.f32.mrf.mxu0
    %v807 = vadd.f32 0.0, %v806
    %v808 = vpop.f32.mrf.mxu0
    %809 = vdwg.mxu0
    %v810 = vsel %vm707, %v792, 0.0
    %v811 = vsel %vm707, %v797, 0.0
    %v812 = vadd.f32 %v810, %v811
    %v813 = vsel %vm707, %v802, 0.0
    %v814 = vadd.f32 %v812, %v813
    %v815 = vsel %vm707, %v807, 0.0
    %v816 = vadd.f32 %v814, %v815
    %v817 = vrot.slane %v816, 4
    %v818 = vadd.f32 %v816, %v817
    %v819 = vrot.slane %v818, 2
    %v820 = vadd.f32 %v818, %v819
    %v821 = vrot.slane %v820, 1
    %v822 = vadd.f32 %v820, %v821
    %v823 = vmul.f32 %v720, 0.001953125
    %v824 = vmul.f32 %v822, 0.001953125
    %v825 = vmul.f32 %v823, %v823
    %v826 = vsub.f32 %v824, %v825
    %v827 = vld [vmem:[%s2] sm:$0x1]
    %v828 = vadd.f32 %v826, 1e-05
    %v829 = vrsqrt.pop %v828
    %v830 = vmul.f32 %v827, %v829
    %v831 = vld [vmem:[%s3] sm:$0x1]
    %v832 = vmul.f32 %v823, %v830
    %v833 = vsub.f32 %v831, %v832
    %v834 = vld [vmem:[%s8] sm:$0xff]
    %v836 = vsel %vm707, %v830, 0
    %838 = vmatprep.subr.mxu0 0.0
    %839 = vmatpush1.msra.mxu0 0.0
    %840 = vmatprep.subr.mxu0 0.0
    %841 = vmatpush1.msra.mxu0 0.0
    %842 = vmatprep.subr.mxu0 0.0
    %843 = vmatpush1.msra.mxu0 0.0
    %844 = vmatprep.subr.mxu0 0.0
    %845 = vmatpush1.msra.mxu0 0.0
    %846 = vmatprep.subr.mxu0 0.0
    %847 = vmatpush1.msra.mxu0 0.0
    %848 = vmatprep.subr.mxu0 0.0
    %849 = vmatpush1.msra.mxu0 0.0
    %850 = vmatprep.subr.mxu0 0.0
    %851 = vmatpush1.msra.mxu0 0.0
    %852 = vmatprep.subr.mxu0 0.0
    %853 = vmatpush1.msra.mxu0 0.0
    %854 = vmatprep.subr.mxu0 0.0
    %855 = vmatpush1.msra.mxu0 0.0
    %856 = vmatprep.subr.mxu0 0.0
    %857 = vmatpush1.msra.mxu0 0.0
    %858 = vmatprep.subr.mxu0 0.0
    %859 = vmatpush1.msra.mxu0 0.0
    %860 = vmatprep.subr.mxu0 0.0
    %861 = vmatpush1.msra.mxu0 0.0
    %862 = vmatprep.subr.mxu0 0.0
    %863 = vmatpush1.msra.mxu0 0.0
    %864 = vmatprep.subr.mxu0 0.0
    %865 = vmatpush1.msra.mxu0 0.0
    %866 = vmatprep.subr.mxu0 0.0
    %867 = vmatpush1.msra.mxu0 0.0
    %868 = vmatprep.subr.mxu0 0.0
    %869 = vmatpush1.msra.mxu0 %v834
    %870 = vmatprep.subr.mxu0 0.0
    %871 = vmatpush2.msra.mxu0 0.0
    %872 = vmatprep.subr.mxu0 0.0
    %873 = vmatpush2.msra.mxu0 0.0
    %874 = vmatprep.subr.mxu0 0.0
    %875 = vmatpush2.msra.mxu0 0.0
    %876 = vmatprep.subr.mxu0 0.0
    %877 = vmatpush2.msra.mxu0 0.0
    %878 = vmatprep.subr.mxu0 0.0
    %879 = vmatpush2.msra.mxu0 0.0
    %880 = vmatprep.subr.mxu0 0.0
    %881 = vmatpush2.msra.mxu0 0.0
    %882 = vmatprep.subr.mxu0 0.0
    %883 = vmatpush2.msra.mxu0 0.0
    %884 = vmatprep.subr.mxu0 0.0
    %885 = vmatpush2.msra.mxu0 0.0
    %886 = vmatprep.subr.mxu0 0.0
    %887 = vmatpush2.msra.mxu0 0.0
    %888 = vmatprep.subr.mxu0 0.0
    %889 = vmatpush2.msra.mxu0 0.0
    %890 = vmatprep.subr.mxu0 0.0
    %891 = vmatpush2.msra.mxu0 0.0
    %892 = vmatprep.subr.mxu0 0.0
    %893 = vmatpush2.msra.mxu0 0.0
    %894 = vmatprep.subr.mxu0 0.0
    %895 = vmatpush2.msra.mxu0 0.0
    %896 = vmatprep.subr.mxu0 0.0
    %897 = vmatpush2.msra.mxu0 0.0
    %898 = vmatprep.subr.mxu0 0.0
    %899 = vmatpush2.msra.mxu0 0.0
    %900 = vmatprep.subr.mxu0 0.0
    %901 = vmatpush2.msra.mxu0 0.0
    %902 = vmatprep.mubr.f32.mxu0 0.0
    %903 = vmatmul.mubr.f32.gmra.mxu0 %v836
    %v904 = vpop.f32.mrf.mxu0
    %v905 = vadd.f32 0.0, %v904
    %v906 = vpop.f32.mrf.mxu0
    %907 = vdwg.mxu0
    %v909 = vsel %vm707, %v833, 0
    %911 = vmatprep.subr.mxu0 0.0
    %912 = vmatpush1.msra.mxu0 0.0
    %913 = vmatprep.subr.mxu0 0.0
    %914 = vmatpush1.msra.mxu0 0.0
    %915 = vmatprep.subr.mxu0 0.0
    %916 = vmatpush1.msra.mxu0 0.0
    %917 = vmatprep.subr.mxu0 0.0
    %918 = vmatpush1.msra.mxu0 0.0
    %919 = vmatprep.subr.mxu0 0.0
    %920 = vmatpush1.msra.mxu0 0.0
    %921 = vmatprep.subr.mxu0 0.0
    %922 = vmatpush1.msra.mxu0 0.0
    %923 = vmatprep.subr.mxu0 0.0
    %924 = vmatpush1.msra.mxu0 0.0
    %925 = vmatprep.subr.mxu0 0.0
    %926 = vmatpush1.msra.mxu0 0.0
    %927 = vmatprep.subr.mxu0 0.0
    %928 = vmatpush1.msra.mxu0 0.0
    %929 = vmatprep.subr.mxu0 0.0
    %930 = vmatpush1.msra.mxu0 0.0
    %931 = vmatprep.subr.mxu0 0.0
    %932 = vmatpush1.msra.mxu0 0.0
    %933 = vmatprep.subr.mxu0 0.0
    %934 = vmatpush1.msra.mxu0 0.0
    %935 = vmatprep.subr.mxu0 0.0
    %936 = vmatpush1.msra.mxu0 0.0
    %937 = vmatprep.subr.mxu0 0.0
    %938 = vmatpush1.msra.mxu0 0.0
    %939 = vmatprep.subr.mxu0 0.0
    %940 = vmatpush1.msra.mxu0 0.0
    %941 = vmatprep.subr.mxu0 0.0
    %942 = vmatpush1.msra.mxu0 %v834
    %943 = vmatprep.subr.mxu0 0.0
    %944 = vmatpush2.msra.mxu0 0.0
    %945 = vmatprep.subr.mxu0 0.0
    %946 = vmatpush2.msra.mxu0 0.0
    %947 = vmatprep.subr.mxu0 0.0
    %948 = vmatpush2.msra.mxu0 0.0
    %949 = vmatprep.subr.mxu0 0.0
    %950 = vmatpush2.msra.mxu0 0.0
    %951 = vmatprep.subr.mxu0 0.0
    %952 = vmatpush2.msra.mxu0 0.0
    %953 = vmatprep.subr.mxu0 0.0
    %954 = vmatpush2.msra.mxu0 0.0
    %955 = vmatprep.subr.mxu0 0.0
    %956 = vmatpush2.msra.mxu0 0.0
    %957 = vmatprep.subr.mxu0 0.0
    %958 = vmatpush2.msra.mxu0 0.0
    %959 = vmatprep.subr.mxu0 0.0
    %960 = vmatpush2.msra.mxu0 0.0
    %961 = vmatprep.subr.mxu0 0.0
    %962 = vmatpush2.msra.mxu0 0.0
    %963 = vmatprep.subr.mxu0 0.0
    %964 = vmatpush2.msra.mxu0 0.0
    %965 = vmatprep.subr.mxu0 0.0
    %966 = vmatpush2.msra.mxu0 0.0
    %967 = vmatprep.subr.mxu0 0.0
    %968 = vmatpush2.msra.mxu0 0.0
    %969 = vmatprep.subr.mxu0 0.0
    %970 = vmatpush2.msra.mxu0 0.0
    %971 = vmatprep.subr.mxu0 0.0
    %972 = vmatpush2.msra.mxu0 0.0
    %973 = vmatprep.subr.mxu0 0.0
    %974 = vmatpush2.msra.mxu0 0.0
    %975 = vmatprep.mubr.f32.mxu0 0.0
    %976 = vmatmul.mubr.f32.gmra.mxu0 %v909
    %v977 = vpop.f32.mrf.mxu0
    %v978 = vadd.f32 0.0, %v977
    %v979 = vpop.f32.mrf.mxu0
    %980 = vdwg.mxu0
    %v981 = vlaneseq
    %v982 = vshrl.u32 %v981, 7
    %v983 = vsub.s32 0, %v982
    %v984 = vrot.slane %v905, %v983
    %v985 = vmul.f32 %v602, %v984
    %v986 = vmul.f32 %v603, %v984
    %v987 = vmul.f32 %v604, %v984
    %v988 = vmul.f32 %v605, %v984
    %v989 = vlaneseq
    %v990 = vshrl.u32 %v989, 7
    %v991 = vsub.s32 0, %v990
    %v992 = vrot.slane %v978, %v991
    %v993 = vadd.f32 %v985, %v992
    %v994 = vadd.f32 %v986, %v992
    %v995 = vadd.f32 %v987, %v992
    %v996 = vadd.f32 %v988, %v992
    %v997 = vmax.f32 %v993, 0.0
    %v998 = vmax.f32 %v994, 0.0
    %v999 = vmax.f32 %v995, 0.0
    %v1000 = vmax.f32 %v996, 0.0
    %v1001 = vpack.c.bf16 %v998, %v997
    %v1002 = vpack.c.bf16 %v1000, %v999
    %v1005 = vunpack.c.l.b16 %v1001
    %v1006 = vunpack.c.h.b16 %v1001
    %v1007 = vunpack.c.l.b16 %v1002
    %v1008 = vunpack.c.h.b16 %v1002
    %v1009 = vpack.c.b16 %v1005, %v1005
    %v1010 = vpack.c.b16 %v1006, %v1006
    %v1011 = vpack.c.b16 %v1007, %v1007
    %v1012 = vpack.c.b16 %v1008, %v1008
    %v1014 = vshrl.u32 %v1009, 16
    %v1016 = vrot.slane %v1014, 7
    %v1017 = vshll.u32 %v1009, 16
    %v1019 = vor.u32 %v1016, %v1017
    %v1020 = vrot.slane %v1016, 4
    %v1022 = vshrl.u32 %v1010, 16
    %v1024 = vrot.slane %v1022, 7
    %v1025 = vshll.u32 %v1010, 16
    %v1027 = vor.u32 %v1024, %v1025
    %v1028 = vsel %vm96, %v1020, %v1027
    %v1029 = vrot.slane %v1024, 4
    %v1031 = vshrl.u32 %v1011, 16
    %v1033 = vrot.slane %v1031, 7
    %v1034 = vshll.u32 %v1011, 16
    %v1036 = vor.u32 %v1033, %v1034
    %v1037 = vrot.slane %v1033, 4
    %v1039 = vshrl.u32 %v1012, 16
    %v1041 = vrot.slane %v1039, 7
    %v1042 = vshll.u32 %v1012, 16
    %v1044 = vor.u32 %v1041, %v1042
    %v1045 = vsel %vm96, %v1037, %v1044
    %v1046 = vrot.slane %v1041, 4
    %v1053 = vsel %vm138, %v1019, %v153
    %1054 = vst [vmem:[#allocation2] sm:$0xf] %v1053
    %1055 = vst [vmem:[#allocation2 + $0x4] sm:$0xf] %v1028
    %v1056 = vld [vmem:[#allocation2 + $0x8] sm:$0x1]
    %v1057 = vsel %vm64, %v1029, %v1056
    %1058 = vst [vmem:[#allocation2 + $0x8] sm:$0x1] %v1057
    %v1059 = vld [vmem:[#allocation2 + $0xc] sm:$0xf]
    %v1060 = vsel %vm138, %v1036, %v1059
    %1061 = vst [vmem:[#allocation2 + $0xc] sm:$0xf] %v1060
    %1062 = vst [vmem:[#allocation2 + $0x10] sm:$0xf] %v1045
    %v1063 = vld [vmem:[#allocation2 + $0x14] sm:$0x1]
    %v1064 = vsel %vm64, %v1046, %v1063
    %1065 = vst [vmem:[#allocation2 + $0x14] sm:$0x1] %v1064
    %v1066 = vld [vmem:[#allocation2] sm:$0xf]
    %v1067 = vld [vmem:[#allocation2 + $0x4] sm:$0xf]
    %v1068 = vld [vmem:[#allocation2 + $0xc] sm:$0xf]
    %v1069 = vld [vmem:[#allocation2 + $0x10] sm:$0xf]
    %v1070 = vld [vmem:[#allocation6] sm:$0xf]
    %v1071 = vld [vmem:[#allocation6 + $0x4] sm:$0xf]
    %v1072 = vld [vmem:[#allocation6 + $0x8] sm:$0xf]
    %v1073 = vld [vmem:[#allocation6 + $0xc] sm:$0xf]
    %v1074 = vld [vmem:[#allocation6 + $0x10] sm:$0xf]
    %v1075 = vld [vmem:[#allocation6 + $0x14] sm:$0xf]
    %v1076 = vld [vmem:[#allocation6 + $0x18] sm:$0xf]
    %v1077 = vld [vmem:[#allocation6 + $0x1c] sm:$0xf]
    %v1078 = vld [vmem:[#allocation6 + $0x20] sm:$0xf]
    %v1079 = vld [vmem:[#allocation6 + $0x24] sm:$0xf]
    %v1080 = vld [vmem:[#allocation6 + $0x28] sm:$0xf]
    %v1081 = vld [vmem:[#allocation6 + $0x2c] sm:$0xf]
    %v1082 = vld [vmem:[#allocation6 + $0x30] sm:$0xf]
    %v1083 = vld [vmem:[#allocation6 + $0x34] sm:$0xf]
    %v1084 = vld [vmem:[#allocation6 + $0x38] sm:$0xf]
    %v1085 = vld [vmem:[#allocation6 + $0x3c] sm:$0xf]
    %v1086 = vld [vmem:[#allocation2 + $0x8] sm:$0x1]
    %v1087 = vld [vmem:[#allocation2 + $0x14] sm:$0x1]
    %v1089 = vshrl.u32 %v1066, 16
    %v1091 = vrot.slane %v1089, 4
    %v1092 = vshll.u32 %v1066, 16
    %v1094 = vrot.slane %v1092, 5
    %v1095 = vor.u32 %v1091, %v1094
    %v1096 = vrot.slane %v1095, 4
    %v1098 = vshll.u32 %v1067, 16
    %v1100 = vrot.slane %v1098, 5
    %v1101 = vsel %vm177, %v1096, %v1100
    %v1102 = vshrl.u32 %v1067, 16
    %v1104 = vrot.slane %v1102, 4
    %v1105 = vor.u32 %v1104, %v1100
    %v1106 = vrot.slane %v1105, 4
    %v1108 = vshll.u32 %v1086, 16
    %v1110 = vrot.slane %v1108, 5
    %v1111 = vsel %vm177, %v1106, %v1110
    %v1113 = vshrl.u32 %v1068, 16
    %v1115 = vrot.slane %v1113, 4
    %v1116 = vshll.u32 %v1068, 16
    %v1118 = vrot.slane %v1116, 5
    %v1119 = vor.u32 %v1115, %v1118
    %v1120 = vrot.slane %v1119, 4
    %v1122 = vshll.u32 %v1069, 16
    %v1124 = vrot.slane %v1122, 5
    %v1125 = vsel %vm177, %v1120, %v1124
    %v1126 = vshrl.u32 %v1069, 16
    %v1128 = vrot.slane %v1126, 4
    %v1129 = vor.u32 %v1128, %v1124
    %v1130 = vrot.slane %v1129, 4
    %v1132 = vshll.u32 %v1087, 16
    %v1134 = vrot.slane %v1132, 5
    %v1135 = vsel %vm177, %v1130, %v1134
    %s1136 = scalar_lea.vmem [#allocation6], 64
    %v1137 = vld [vmem:[%s1136] sm:$0xf]
    %v1138 = vld [vmem:[%s1136 + $0x4] sm:$0xf]
    %v1139 = vld [vmem:[%s1136 + $0x8] sm:$0xf]
    %v1140 = vld [vmem:[%s1136 + $0xc] sm:$0xf]
    %v1141 = vld [vmem:[%s1136 + $0x10] sm:$0xf]
    %v1142 = vld [vmem:[%s1136 + $0x14] sm:$0xf]
    %v1143 = vld [vmem:[%s1136 + $0x18] sm:$0xf]
    %v1144 = vld [vmem:[%s1136 + $0x1c] sm:$0xf]
    %v1145 = vld [vmem:[%s1136 + $0x20] sm:$0xf]
    %v1146 = vld [vmem:[%s1136 + $0x24] sm:$0xf]
    %v1147 = vld [vmem:[%s1136 + $0x28] sm:$0xf]
    %v1148 = vld [vmem:[%s1136 + $0x2c] sm:$0xf]
    %v1149 = vld [vmem:[%s1136 + $0x30] sm:$0xf]
    %v1150 = vld [vmem:[%s1136 + $0x34] sm:$0xf]
    %v1151 = vld [vmem:[%s1136 + $0x38] sm:$0xf]
    %v1152 = vld [vmem:[%s1136 + $0x3c] sm:$0xf]
    %v1153 = vunpack.c.l.b16 %v1101
    %v1154 = vunpack.c.l.b16 %v1111
    %v1155 = vunpack.c.l.b16 %v1125
    %v1156 = vunpack.c.l.b16 %v1135
    %v1157 = vpack.c.b16 %v1154, %v1153
    %v1158 = vpack.c.b16 %v1156, %v1155
    %v1177 = vunpack.c.l.b16 %v1137
    %v1178 = vunpack.c.l.b16 %v1138
    %v1179 = vunpack.c.l.b16 %v1139
    %v1180 = vunpack.c.l.b16 %v1140
    %v1181 = vunpack.c.l.b16 %v1141
    %v1182 = vunpack.c.l.b16 %v1142
    %v1183 = vunpack.c.l.b16 %v1143
    %v1184 = vunpack.c.l.b16 %v1144
    %v1185 = vunpack.c.l.b16 %v1145
    %v1186 = vunpack.c.l.b16 %v1146
    %v1187 = vunpack.c.l.b16 %v1147
    %v1188 = vunpack.c.l.b16 %v1148
    %v1189 = vunpack.c.l.b16 %v1149
    %v1190 = vunpack.c.l.b16 %v1150
    %v1191 = vunpack.c.l.b16 %v1151
    %v1192 = vunpack.c.l.b16 %v1152
    %v1193 = vpack.c.b16 %v1178, %v1177
    %v1194 = vpack.c.b16 %v1180, %v1179
    %v1195 = vpack.c.b16 %v1182, %v1181
    %v1196 = vpack.c.b16 %v1184, %v1183
    %v1197 = vpack.c.b16 %v1186, %v1185
    %v1198 = vpack.c.b16 %v1188, %v1187
    %v1199 = vpack.c.b16 %v1190, %v1189
    %v1200 = vpack.c.b16 %v1192, %v1191
    %1209 = vmatprep.subr.bf16.mxu0 0
    %1210 = vmatpush1.bf16.msra.mxu0 %v1200
    %1211 = vmatprep.subr.bf16.mxu0 0
    %1212 = vmatpush1.bf16.msra.mxu0 %v1199
    %1213 = vmatprep.subr.bf16.mxu0 0
    %1214 = vmatpush1.bf16.msra.mxu0 %v1198
    %1215 = vmatprep.subr.bf16.mxu0 0
    %1216 = vmatpush1.bf16.msra.mxu0 %v1197
    %1217 = vmatprep.subr.bf16.mxu0 0
    %1218 = vmatpush1.bf16.msra.mxu0 %v1196
    %1219 = vmatprep.subr.bf16.mxu0 0
    %1220 = vmatpush1.bf16.msra.mxu0 %v1195
    %1221 = vmatprep.subr.bf16.mxu0 0
    %1222 = vmatpush1.bf16.msra.mxu0 %v1194
    %1223 = vmatprep.subr.bf16.mxu0 0
    %1224 = vmatpush1.bf16.msra.mxu0 %v1193
    %1225 = vmatprep.subr.bf16.mxu0 0
    %1226 = vmatpush2.bf16.msra.mxu0 0
    %1227 = vmatprep.subr.bf16.mxu0 0
    %1228 = vmatpush2.bf16.msra.mxu0 0
    %1229 = vmatprep.subr.bf16.mxu0 0
    %1230 = vmatpush2.bf16.msra.mxu0 0
    %1231 = vmatprep.subr.bf16.mxu0 0
    %1232 = vmatpush2.bf16.msra.mxu0 0
    %1233 = vmatprep.subr.bf16.mxu0 0
    %1234 = vmatpush2.bf16.msra.mxu0 0
    %1235 = vmatprep.subr.bf16.mxu0 0
    %1236 = vmatpush2.bf16.msra.mxu0 0
    %1237 = vmatprep.subr.bf16.mxu0 0
    %1238 = vmatpush2.bf16.msra.mxu0 0
    %1239 = vmatprep.subr.bf16.mxu0 0
    %1240 = vmatpush2.bf16.msra.mxu0 0
    %1241 = vmatprep.mubr.bf16.mxu0 0
    %1242 = vmatmul.mubr.bf16.gmra.mxu0 %v1157
    %v1243 = vpop.f32.mrf.mxu0
    %v1244 = vadd.f32 0.0, %v1243
    %v1245 = vpop.f32.mrf.mxu0
    %v1246 = vpop.f32.mrf.mxu0
    %v1247 = vadd.f32 0.0, %v1246
    %v1248 = vpop.f32.mrf.mxu0
    %1249 = vmatprep.mubr.bf16.mxu0 0
    %1250 = vmatmul.mubr.bf16.gmra.mxu0 %v1158
    %v1251 = vpop.f32.mrf.mxu0
    %v1252 = vadd.f32 0.0, %v1251
    %v1253 = vpop.f32.mrf.mxu0
    %v1254 = vpop.f32.mrf.mxu0
    %v1255 = vadd.f32 0.0, %v1254
    %v1256 = vpop.f32.mrf.mxu0
    %1257 = vdwg.mxu0
    %v1262 = vunpack.c.l.b16 %v1066
    %v1263 = vunpack.c.l.b16 %v1067
    %v1264 = vunpack.c.l.b16 %v1068
    %v1265 = vunpack.c.l.b16 %v1069
    %v1266 = vpack.c.b16 %v1263, %v1262
    %v1267 = vpack.c.b16 %v1265, %v1264
    %v1286 = vunpack.c.l.b16 %v1070
    %v1287 = vunpack.c.l.b16 %v1071
    %v1288 = vunpack.c.l.b16 %v1072
    %v1289 = vunpack.c.l.b16 %v1073
    %v1290 = vunpack.c.l.b16 %v1074
    %v1291 = vunpack.c.l.b16 %v1075
    %v1292 = vunpack.c.l.b16 %v1076
    %v1293 = vunpack.c.l.b16 %v1077
    %v1294 = vunpack.c.l.b16 %v1078
    %v1295 = vunpack.c.l.b16 %v1079
    %v1296 = vunpack.c.l.b16 %v1080
    %v1297 = vunpack.c.l.b16 %v1081
    %v1298 = vunpack.c.l.b16 %v1082
    %v1299 = vunpack.c.l.b16 %v1083
    %v1300 = vunpack.c.l.b16 %v1084
    %v1301 = vunpack.c.l.b16 %v1085
    %v1302 = vpack.c.b16 %v1287, %v1286
    %v1303 = vpack.c.b16 %v1289, %v1288
    %v1304 = vpack.c.b16 %v1291, %v1290
    %v1305 = vpack.c.b16 %v1293, %v1292
    %v1306 = vpack.c.b16 %v1295, %v1294
    %v1307 = vpack.c.b16 %v1297, %v1296
    %v1308 = vpack.c.b16 %v1299, %v1298
    %v1309 = vpack.c.b16 %v1301, %v1300
    %1318 = vmatprep.subr.bf16.mxu0 0
    %1319 = vmatpush1.bf16.msra.mxu0 %v1309
    %1320 = vmatprep.subr.bf16.mxu0 0
    %1321 = vmatpush1.bf16.msra.mxu0 %v1308
    %1322 = vmatprep.subr.bf16.mxu0 0
    %1323 = vmatpush1.bf16.msra.mxu0 %v1307
    %1324 = vmatprep.subr.bf16.mxu0 0
    %1325 = vmatpush1.bf16.msra.mxu0 %v1306
    %1326 = vmatprep.subr.bf16.mxu0 0
    %1327 = vmatpush1.bf16.msra.mxu0 %v1305
    %1328 = vmatprep.subr.bf16.mxu0 0
    %1329 = vmatpush1.bf16.msra.mxu0 %v1304
    %1330 = vmatprep.subr.bf16.mxu0 0
    %1331 = vmatpush1.bf16.msra.mxu0 %v1303
    %1332 = vmatprep.subr.bf16.mxu0 0
    %1333 = vmatpush1.bf16.msra.mxu0 %v1302
    %1334 = vmatprep.subr.bf16.mxu0 0
    %1335 = vmatpush2.bf16.msra.mxu0 0
    %1336 = vmatprep.subr.bf16.mxu0 0
    %1337 = vmatpush2.bf16.msra.mxu0 0
    %1338 = vmatprep.subr.bf16.mxu0 0
    %1339 = vmatpush2.bf16.msra.mxu0 0
    %1340 = vmatprep.subr.bf16.mxu0 0
    %1341 = vmatpush2.bf16.msra.mxu0 0
    %1342 = vmatprep.subr.bf16.mxu0 0
    %1343 = vmatpush2.bf16.msra.mxu0 0
    %1344 = vmatprep.subr.bf16.mxu0 0
    %1345 = vmatpush2.bf16.msra.mxu0 0
    %1346 = vmatprep.subr.bf16.mxu0 0
    %1347 = vmatpush2.bf16.msra.mxu0 0
    %1348 = vmatprep.subr.bf16.mxu0 0
    %1349 = vmatpush2.bf16.msra.mxu0 0
    %1350 = vmatprep.mubr.bf16.mxu0 0
    %1351 = vmatmul.mubr.bf16.gmra.mxu0 %v1266
    %v1352 = vpop.f32.mrf.mxu0
    %v1353 = vadd.f32 %v1244, %v1352
    %v1354 = vpop.f32.mrf.mxu0
    %v1355 = vpop.f32.mrf.mxu0
    %v1356 = vadd.f32 %v1247, %v1355
    %v1357 = vpop.f32.mrf.mxu0
    %1358 = vmatprep.mubr.bf16.mxu0 0
    %1359 = vmatmul.mubr.bf16.gmra.mxu0 %v1267
    %v1360 = vpop.f32.mrf.mxu0
    %v1361 = vadd.f32 %v1252, %v1360
    %v1362 = vpop.f32.mrf.mxu0
    %v1363 = vpop.f32.mrf.mxu0
    %v1364 = vadd.f32 %v1255, %v1363
    %v1365 = vpop.f32.mrf.mxu0
    %1366 = vdwg.mxu0
    %v1367 = vld [vmem:[#allocation2] sm:$0xe]
    %v1368 = vld [vmem:[#allocation2 + $0xc] sm:$0xe]
    %v1373 = vrot.slane %v1367, 5
    %v1374 = vrot.slane %v1373, 4
    %v1375 = vrot.slane %v1067, 5
    %v1376 = vsel %vm465, %v1374, %v1375
    %v1377 = vrot.slane %v1375, 4
    %v1378 = vrot.slane %v1086, 5
    %v1379 = vsel %vm465, %v1377, %v1378
    %v1380 = vrot.slane %v1368, 5
    %v1381 = vrot.slane %v1380, 4
    %v1382 = vrot.slane %v1069, 5
    %v1383 = vsel %vm465, %v1381, %v1382
    %v1384 = vrot.slane %v1382, 4
    %v1385 = vrot.slane %v1087, 5
    %v1386 = vsel %vm465, %v1384, %v1385
    %s1387 = scalar_lea.vmem [#allocation6], 128
    %v1388 = vld [vmem:[%s1387] sm:$0xf]
    %v1389 = vld [vmem:[%s1387 + $0x4] sm:$0xf]
    %v1390 = vld [vmem:[%s1387 + $0x8] sm:$0xf]
    %v1391 = vld [vmem:[%s1387 + $0xc] sm:$0xf]
    %v1392 = vld [vmem:[%s1387 + $0x10] sm:$0xf]
    %v1393 = vld [vmem:[%s1387 + $0x14] sm:$0xf]
    %v1394 = vld [vmem:[%s1387 + $0x18] sm:$0xf]
    %v1395 = vld [vmem:[%s1387 + $0x1c] sm:$0xf]
    %v1396 = vld [vmem:[%s1387 + $0x20] sm:$0xf]
    %v1397 = vld [vmem:[%s1387 + $0x24] sm:$0xf]
    %v1398 = vld [vmem:[%s1387 + $0x28] sm:$0xf]
    %v1399 = vld [vmem:[%s1387 + $0x2c] sm:$0xf]
    %v1400 = vld [vmem:[%s1387 + $0x30] sm:$0xf]
    %v1401 = vld [vmem:[%s1387 + $0x34] sm:$0xf]
    %v1402 = vld [vmem:[%s1387 + $0x38] sm:$0xf]
    %v1403 = vld [vmem:[%s1387 + $0x3c] sm:$0xf]
    %v1404 = vunpack.c.l.b16 %v1376
    %v1405 = vunpack.c.l.b16 %v1379
    %v1406 = vunpack.c.l.b16 %v1383
    %v1407 = vunpack.c.l.b16 %v1386
    %v1408 = vpack.c.b16 %v1405, %v1404
    %v1409 = vpack.c.b16 %v1407, %v1406
    %v1428 = vunpack.c.l.b16 %v1388
    %v1429 = vunpack.c.l.b16 %v1389
    %v1430 = vunpack.c.l.b16 %v1390
    %v1431 = vunpack.c.l.b16 %v1391
    %v1432 = vunpack.c.l.b16 %v1392
    %v1433 = vunpack.c.l.b16 %v1393
    %v1434 = vunpack.c.l.b16 %v1394
    %v1435 = vunpack.c.l.b16 %v1395
    %v1436 = vunpack.c.l.b16 %v1396
    %v1437 = vunpack.c.l.b16 %v1397
    %v1438 = vunpack.c.l.b16 %v1398
    %v1439 = vunpack.c.l.b16 %v1399
    %v1440 = vunpack.c.l.b16 %v1400
    %v1441 = vunpack.c.l.b16 %v1401
    %v1442 = vunpack.c.l.b16 %v1402
    %v1443 = vunpack.c.l.b16 %v1403
    %v1444 = vpack.c.b16 %v1429, %v1428
    %v1445 = vpack.c.b16 %v1431, %v1430
    %v1446 = vpack.c.b16 %v1433, %v1432
    %v1447 = vpack.c.b16 %v1435, %v1434
    %v1448 = vpack.c.b16 %v1437, %v1436
    %v1449 = vpack.c.b16 %v1439, %v1438
    %v1450 = vpack.c.b16 %v1441, %v1440
    %v1451 = vpack.c.b16 %v1443, %v1442
    %1460 = vmatprep.subr.bf16.mxu0 0
    %1461 = vmatpush1.bf16.msra.mxu0 %v1451
    %1462 = vmatprep.subr.bf16.mxu0 0
    %1463 = vmatpush1.bf16.msra.mxu0 %v1450
    %1464 = vmatprep.subr.bf16.mxu0 0
    %1465 = vmatpush1.bf16.msra.mxu0 %v1449
    %1466 = vmatprep.subr.bf16.mxu0 0
    %1467 = vmatpush1.bf16.msra.mxu0 %v1448
    %1468 = vmatprep.subr.bf16.mxu0 0
    %1469 = vmatpush1.bf16.msra.mxu0 %v1447
    %1470 = vmatprep.subr.bf16.mxu0 0
    %1471 = vmatpush1.bf16.msra.mxu0 %v1446
    %1472 = vmatprep.subr.bf16.mxu0 0
    %1473 = vmatpush1.bf16.msra.mxu0 %v1445
    %1474 = vmatprep.subr.bf16.mxu0 0
    %1475 = vmatpush1.bf16.msra.mxu0 %v1444
    %1476 = vmatprep.subr.bf16.mxu0 0
    %1477 = vmatpush2.bf16.msra.mxu0 0
    %1478 = vmatprep.subr.bf16.mxu0 0
    %1479 = vmatpush2.bf16.msra.mxu0 0
    %1480 = vmatprep.subr.bf16.mxu0 0
    %1481 = vmatpush2.bf16.msra.mxu0 0
    %1482 = vmatprep.subr.bf16.mxu0 0
    %1483 = vmatpush2.bf16.msra.mxu0 0
    %1484 = vmatprep.subr.bf16.mxu0 0
    %1485 = vmatpush2.bf16.msra.mxu0 0
    %1486 = vmatprep.subr.bf16.mxu0 0
    %1487 = vmatpush2.bf16.msra.mxu0 0
    %1488 = vmatprep.subr.bf16.mxu0 0
    %1489 = vmatpush2.bf16.msra.mxu0 0
    %1490 = vmatprep.subr.bf16.mxu0 0
    %1491 = vmatpush2.bf16.msra.mxu0 0
    %1492 = vmatprep.mubr.bf16.mxu0 0
    %1493 = vmatmul.mubr.bf16.gmra.mxu0 %v1408
    %v1494 = vpop.f32.mrf.mxu0
    %v1495 = vadd.f32 0.0, %v1494
    %v1496 = vpop.f32.mrf.mxu0
    %v1497 = vpop.f32.mrf.mxu0
    %v1498 = vadd.f32 0.0, %v1497
    %v1499 = vpop.f32.mrf.mxu0
    %1500 = vmatprep.mubr.bf16.mxu0 0
    %1501 = vmatmul.mubr.bf16.gmra.mxu0 %v1409
    %v1502 = vpop.f32.mrf.mxu0
    %v1503 = vadd.f32 0.0, %v1502
    %v1504 = vpop.f32.mrf.mxu0
    %v1505 = vpop.f32.mrf.mxu0
    %v1506 = vadd.f32 0.0, %v1505
    %v1507 = vpop.f32.mrf.mxu0
    %1508 = vdwg.mxu0
    %v1509 = vadd.f32 %v1353, %v1495
    %v1510 = vadd.f32 %v1356, %v1498
    %v1511 = vadd.f32 %v1361, %v1503
    %v1512 = vadd.f32 %v1364, %v1506
    %v1513 = vld [vmem:[%s7] sm:$0xff]
    %v1514 = vld [vmem:[%s7 + $0x8] sm:$0xff]
    %v1515 = vld [vmem:[%s7 + $0x10] sm:$0xff]
    %v1516 = vld [vmem:[%s7 + $0x18] sm:$0xff]
    %v1517 = vld [vmem:[%s7 + $0x20] sm:$0xff]
    %v1518 = vld [vmem:[%s7 + $0x28] sm:$0xff]
    %v1519 = vld [vmem:[%s7 + $0x30] sm:$0xff]
    %v1520 = vld [vmem:[%s7 + $0x38] sm:$0xff]
    %v1521 = vld [vmem:[%s7 + $0x40] sm:$0xff]
    %v1522 = vld [vmem:[%s7 + $0x48] sm:$0xff]
    %v1523 = vld [vmem:[%s7 + $0x50] sm:$0xff]
    %v1524 = vld [vmem:[%s7 + $0x58] sm:$0xff]
    %v1525 = vld [vmem:[%s7 + $0x60] sm:$0xff]
    %v1526 = vld [vmem:[%s7 + $0x68] sm:$0xff]
    %v1527 = vld [vmem:[%s7 + $0x70] sm:$0xff]
    %v1528 = vld [vmem:[%s7 + $0x78] sm:$0xff]
    %1529 = vmatprep.subr.mxu0 0.0
    %1530 = vmatpush1.msra.mxu0 %v1528
    %1531 = vmatprep.subr.mxu0 0.0
    %1532 = vmatpush1.msra.mxu0 %v1527
    %1533 = vmatprep.subr.mxu0 0.0
    %1534 = vmatpush1.msra.mxu0 %v1526
    %1535 = vmatprep.subr.mxu0 0.0
    %1536 = vmatpush1.msra.mxu0 %v1525
    %1537 = vmatprep.subr.mxu0 0.0
    %1538 = vmatpush1.msra.mxu0 %v1524
    %1539 = vmatprep.subr.mxu0 0.0
    %1540 = vmatpush1.msra.mxu0 %v1523
    %1541 = vmatprep.subr.mxu0 0.0
    %1542 = vmatpush1.msra.mxu0 %v1522
    %1543 = vmatprep.subr.mxu0 0.0
    %1544 = vmatpush1.msra.mxu0 %v1521
    %1545 = vmatprep.subr.mxu0 0.0
    %1546 = vmatpush1.msra.mxu0 %v1520
    %1547 = vmatprep.subr.mxu0 0.0
    %1548 = vmatpush1.msra.mxu0 %v1519
    %1549 = vmatprep.subr.mxu0 0.0
    %1550 = vmatpush1.msra.mxu0 %v1518
    %1551 = vmatprep.subr.mxu0 0.0
    %1552 = vmatpush1.msra.mxu0 %v1517
    %1553 = vmatprep.subr.mxu0 0.0
    %1554 = vmatpush1.msra.mxu0 %v1516
    %1555 = vmatprep.subr.mxu0 0.0
    %1556 = vmatpush1.msra.mxu0 %v1515
    %1557 = vmatprep.subr.mxu0 0.0
    %1558 = vmatpush1.msra.mxu0 %v1514
    %1559 = vmatprep.subr.mxu0 0.0
    %1560 = vmatpush1.msra.mxu0 %v1513
    %1561 = vmatprep.subr.mxu0 0.0
    %1562 = vmatpush2.msra.mxu0 0.0
    %1563 = vmatprep.subr.mxu0 0.0
    %1564 = vmatpush2.msra.mxu0 0.0
    %1565 = vmatprep.subr.mxu0 0.0
    %1566 = vmatpush2.msra.mxu0 0.0
    %1567 = vmatprep.subr.mxu0 0.0
    %1568 = vmatpush2.msra.mxu0 0.0
    %1569 = vmatprep.subr.mxu0 0.0
    %1570 = vmatpush2.msra.mxu0 0.0
    %1571 = vmatprep.subr.mxu0 0.0
    %1572 = vmatpush2.msra.mxu0 0.0
    %1573 = vmatprep.subr.mxu0 0.0
    %1574 = vmatpush2.msra.mxu0 0.0
    %1575 = vmatprep.subr.mxu0 0.0
    %1576 = vmatpush2.msra.mxu0 0.0
    %1577 = vmatprep.subr.mxu0 0.0
    %1578 = vmatpush2.msra.mxu0 0.0
    %1579 = vmatprep.subr.mxu0 0.0
    %1580 = vmatpush2.msra.mxu0 0.0
    %1581 = vmatprep.subr.mxu0 0.0
    %1582 = vmatpush2.msra.mxu0 0.0
    %1583 = vmatprep.subr.mxu0 0.0
    %1584 = vmatpush2.msra.mxu0 0.0
    %1585 = vmatprep.subr.mxu0 0.0
    %1586 = vmatpush2.msra.mxu0 0.0
    %1587 = vmatprep.subr.mxu0 0.0
    %1588 = vmatpush2.msra.mxu0 0.0
    %1589 = vmatprep.subr.mxu0 0.0
    %1590 = vmatpush2.msra.mxu0 0.0
    %1591 = vmatprep.subr.mxu0 0.0
    %1592 = vmatpush2.msra.mxu0 0.0
    %1593 = vmatprep.mubr.f32.mxu0 0.0
    %1594 = vmatmul.mubr.f32.gmra.mxu0 %v1509
    %v1595 = vpop.f32.mrf.mxu0
    %v1596 = vadd.f32 0.0, %v1595
    %v1597 = vpop.f32.mrf.mxu0
    %1598 = vmatprep.mubr.f32.mxu0 0.0
    %1599 = vmatmul.mubr.f32.gmra.mxu0 %v1510
    %v1600 = vpop.f32.mrf.mxu0
    %v1601 = vadd.f32 0.0, %v1600
    %v1602 = vpop.f32.mrf.mxu0
    %1603 = vmatprep.mubr.f32.mxu0 0.0
    %1604 = vmatmul.mubr.f32.gmra.mxu0 %v1511
    %v1605 = vpop.f32.mrf.mxu0
    %v1606 = vadd.f32 0.0, %v1605
    %v1607 = vpop.f32.mrf.mxu0
    %1608 = vmatprep.mubr.f32.mxu0 0.0
    %1609 = vmatmul.mubr.f32.gmra.mxu0 %v1512
    %v1610 = vpop.f32.mrf.mxu0
    %v1611 = vadd.f32 0.0, %v1610
    %v1612 = vpop.f32.mrf.mxu0
    %1613 = vdwg.mxu0
    %v1614 = vsel %vm707, %v1596, 0.0
    %v1615 = vsel %vm707, %v1601, 0.0
    %v1616 = vadd.f32 %v1614, %v1615
    %v1617 = vsel %vm707, %v1606, 0.0
    %v1618 = vadd.f32 %v1616, %v1617
    %v1619 = vsel %vm707, %v1611, 0.0
    %v1620 = vadd.f32 %v1618, %v1619
    %v1621 = vrot.slane %v1620, 4
    %v1622 = vadd.f32 %v1620, %v1621
    %v1623 = vrot.slane %v1622, 2
    %v1624 = vadd.f32 %v1622, %v1623
    %v1625 = vrot.slane %v1624, 1
    %v1626 = vadd.f32 %v1624, %v1625
    %v1627 = vmul.f32 %v1509, %v1509
    %v1628 = vmul.f32 %v1510, %v1510
    %v1629 = vmul.f32 %v1511, %v1511
    %v1630 = vmul.f32 %v1512, %v1512
    %1631 = vmatprep.subr.mxu0 0.0
    %1632 = vmatpush1.msra.mxu0 %v1528
    %1633 = vmatprep.subr.mxu0 0.0
    %1634 = vmatpush1.msra.mxu0 %v1527
    %1635 = vmatprep.subr.mxu0 0.0
    %1636 = vmatpush1.msra.mxu0 %v1526
    %1637 = vmatprep.subr.mxu0 0.0
    %1638 = vmatpush1.msra.mxu0 %v1525
    %1639 = vmatprep.subr.mxu0 0.0
    %1640 = vmatpush1.msra.mxu0 %v1524
    %1641 = vmatprep.subr.mxu0 0.0
    %1642 = vmatpush1.msra.mxu0 %v1523
    %1643 = vmatprep.subr.mxu0 0.0
    %1644 = vmatpush1.msra.mxu0 %v1522
    %1645 = vmatprep.subr.mxu0 0.0
    %1646 = vmatpush1.msra.mxu0 %v1521
    %1647 = vmatprep.subr.mxu0 0.0
    %1648 = vmatpush1.msra.mxu0 %v1520
    %1649 = vmatprep.subr.mxu0 0.0
    %1650 = vmatpush1.msra.mxu0 %v1519
    %1651 = vmatprep.subr.mxu0 0.0
    %1652 = vmatpush1.msra.mxu0 %v1518
    %1653 = vmatprep.subr.mxu0 0.0
    %1654 = vmatpush1.msra.mxu0 %v1517
    %1655 = vmatprep.subr.mxu0 0.0
    %1656 = vmatpush1.msra.mxu0 %v1516
    %1657 = vmatprep.subr.mxu0 0.0
    %1658 = vmatpush1.msra.mxu0 %v1515
    %1659 = vmatprep.subr.mxu0 0.0
    %1660 = vmatpush1.msra.mxu0 %v1514
    %1661 = vmatprep.subr.mxu0 0.0
    %1662 = vmatpush1.msra.mxu0 %v1513
    %1663 = vmatprep.subr.mxu0 0.0
    %1664 = vmatpush2.msra.mxu0 0.0
    %1665 = vmatprep.subr.mxu0 0.0
    %1666 = vmatpush2.msra.mxu0 0.0
    %1667 = vmatprep.subr.mxu0 0.0
    %1668 = vmatpush2.msra.mxu0 0.0
    %1669 = vmatprep.subr.mxu0 0.0
    %1670 = vmatpush2.msra.mxu0 0.0
    %1671 = vmatprep.subr.mxu0 0.0
    %1672 = vmatpush2.msra.mxu0 0.0
    %1673 = vmatprep.subr.mxu0 0.0
    %1674 = vmatpush2.msra.mxu0 0.0
    %1675 = vmatprep.subr.mxu0 0.0
    %1676 = vmatpush2.msra.mxu0 0.0
    %1677 = vmatprep.subr.mxu0 0.0
    %1678 = vmatpush2.msra.mxu0 0.0
    %1679 = vmatprep.subr.mxu0 0.0
    %1680 = vmatpush2.msra.mxu0 0.0
    %1681 = vmatprep.subr.mxu0 0.0
    %1682 = vmatpush2.msra.mxu0 0.0
    %1683 = vmatprep.subr.mxu0 0.0
    %1684 = vmatpush2.msra.mxu0 0.0
    %1685 = vmatprep.subr.mxu0 0.0
    %1686 = vmatpush2.msra.mxu0 0.0
    %1687 = vmatprep.subr.mxu0 0.0
    %1688 = vmatpush2.msra.mxu0 0.0
    %1689 = vmatprep.subr.mxu0 0.0
    %1690 = vmatpush2.msra.mxu0 0.0
    %1691 = vmatprep.subr.mxu0 0.0
    %1692 = vmatpush2.msra.mxu0 0.0
    %1693 = vmatprep.subr.mxu0 0.0
    %1694 = vmatpush2.msra.mxu0 0.0
    %1695 = vmatprep.mubr.f32.mxu0 0.0
    %1696 = vmatmul.mubr.f32.gmra.mxu0 %v1627
    %v1697 = vpop.f32.mrf.mxu0
    %v1698 = vadd.f32 0.0, %v1697
    %v1699 = vpop.f32.mrf.mxu0
    %1700 = vmatprep.mubr.f32.mxu0 0.0
    %1701 = vmatmul.mubr.f32.gmra.mxu0 %v1628
    %v1702 = vpop.f32.mrf.mxu0
    %v1703 = vadd.f32 0.0, %v1702
    %v1704 = vpop.f32.mrf.mxu0
    %1705 = vmatprep.mubr.f32.mxu0 0.0
    %1706 = vmatmul.mubr.f32.gmra.mxu0 %v1629
    %v1707 = vpop.f32.mrf.mxu0
    %v1708 = vadd.f32 0.0, %v1707
    %v1709 = vpop.f32.mrf.mxu0
    %1710 = vmatprep.mubr.f32.mxu0 0.0
    %1711 = vmatmul.mubr.f32.gmra.mxu0 %v1630
    %v1712 = vpop.f32.mrf.mxu0
    %v1713 = vadd.f32 0.0, %v1712
    %v1714 = vpop.f32.mrf.mxu0
    %1715 = vdwg.mxu0
    %v1716 = vsel %vm707, %v1698, 0.0
    %v1717 = vsel %vm707, %v1703, 0.0
    %v1718 = vadd.f32 %v1716, %v1717
    %v1719 = vsel %vm707, %v1708, 0.0
    %v1720 = vadd.f32 %v1718, %v1719
    %v1721 = vsel %vm707, %v1713, 0.0
    %v1722 = vadd.f32 %v1720, %v1721
    %v1723 = vrot.slane %v1722, 4
    %v1724 = vadd.f32 %v1722, %v1723
    %v1725 = vrot.slane %v1724, 2
    %v1726 = vadd.f32 %v1724, %v1725
    %v1727 = vrot.slane %v1726, 1
    %v1728 = vadd.f32 %v1726, %v1727
    %v1729 = vmul.f32 %v1626, 0.001953125
    %v1730 = vmul.f32 %v1728, 0.001953125
    %v1731 = vmul.f32 %v1729, %v1729
    %v1732 = vsub.f32 %v1730, %v1731
    %v1733 = vld [vmem:[%s5] sm:$0x1]
    %v1734 = vadd.f32 %v1732, 1e-05
    %v1735 = vrsqrt.pop %v1734
    %v1736 = vmul.f32 %v1733, %v1735
    %v1737 = vld [vmem:[%s6] sm:$0x1]
    %v1738 = vmul.f32 %v1729, %v1736
    %v1739 = vsub.f32 %v1737, %v1738
    %v1740 = vld [vmem:[%s8] sm:$0xff]
    %v1742 = vsel %vm707, %v1736, 0
    %1744 = vmatprep.subr.mxu0 0.0
    %1745 = vmatpush1.msra.mxu0 0.0
    %1746 = vmatprep.subr.mxu0 0.0
    %1747 = vmatpush1.msra.mxu0 0.0
    %1748 = vmatprep.subr.mxu0 0.0
    %1749 = vmatpush1.msra.mxu0 0.0
    %1750 = vmatprep.subr.mxu0 0.0
    %1751 = vmatpush1.msra.mxu0 0.0
    %1752 = vmatprep.subr.mxu0 0.0
    %1753 = vmatpush1.msra.mxu0 0.0
    %1754 = vmatprep.subr.mxu0 0.0
    %1755 = vmatpush1.msra.mxu0 0.0
    %1756 = vmatprep.subr.mxu0 0.0
    %1757 = vmatpush1.msra.mxu0 0.0
    %1758 = vmatprep.subr.mxu0 0.0
    %1759 = vmatpush1.msra.mxu0 0.0
    %1760 = vmatprep.subr.mxu0 0.0
    %1761 = vmatpush1.msra.mxu0 0.0
    %1762 = vmatprep.subr.mxu0 0.0
    %1763 = vmatpush1.msra.mxu0 0.0
    %1764 = vmatprep.subr.mxu0 0.0
    %1765 = vmatpush1.msra.mxu0 0.0
    %1766 = vmatprep.subr.mxu0 0.0
    %1767 = vmatpush1.msra.mxu0 0.0
    %1768 = vmatprep.subr.mxu0 0.0
    %1769 = vmatpush1.msra.mxu0 0.0
    %1770 = vmatprep.subr.mxu0 0.0
    %1771 = vmatpush1.msra.mxu0 0.0
    %1772 = vmatprep.subr.mxu0 0.0
    %1773 = vmatpush1.msra.mxu0 0.0
    %1774 = vmatprep.subr.mxu0 0.0
    %1775 = vmatpush1.msra.mxu0 %v1740
    %1776 = vmatprep.subr.mxu0 0.0
    %1777 = vmatpush2.msra.mxu0 0.0
    %1778 = vmatprep.subr.mxu0 0.0
    %1779 = vmatpush2.msra.mxu0 0.0
    %1780 = vmatprep.subr.mxu0 0.0
    %1781 = vmatpush2.msra.mxu0 0.0
    %1782 = vmatprep.subr.mxu0 0.0
    %1783 = vmatpush2.msra.mxu0 0.0
    %1784 = vmatprep.subr.mxu0 0.0
    %1785 = vmatpush2.msra.mxu0 0.0
    %1786 = vmatprep.subr.mxu0 0.0
    %1787 = vmatpush2.msra.mxu0 0.0
    %1788 = vmatprep.subr.mxu0 0.0
    %1789 = vmatpush2.msra.mxu0 0.0
    %1790 = vmatprep.subr.mxu0 0.0
    %1791 = vmatpush2.msra.mxu0 0.0
    %1792 = vmatprep.subr.mxu0 0.0
    %1793 = vmatpush2.msra.mxu0 0.0
    %1794 = vmatprep.subr.mxu0 0.0
    %1795 = vmatpush2.msra.mxu0 0.0
    %1796 = vmatprep.subr.mxu0 0.0
    %1797 = vmatpush2.msra.mxu0 0.0
    %1798 = vmatprep.subr.mxu0 0.0
    %1799 = vmatpush2.msra.mxu0 0.0
    %1800 = vmatprep.subr.mxu0 0.0
    %1801 = vmatpush2.msra.mxu0 0.0
    %1802 = vmatprep.subr.mxu0 0.0
    %1803 = vmatpush2.msra.mxu0 0.0
    %1804 = vmatprep.subr.mxu0 0.0
    %1805 = vmatpush2.msra.mxu0 0.0
    %1806 = vmatprep.subr.mxu0 0.0
    %1807 = vmatpush2.msra.mxu0 0.0
    %1808 = vmatprep.mubr.f32.mxu0 0.0
    %1809 = vmatmul.mubr.f32.gmra.mxu0 %v1742
    %v1810 = vpop.f32.mrf.mxu0
    %v1811 = vadd.f32 0.0, %v1810
    %v1812 = vpop.f32.mrf.mxu0
    %1813 = vdwg.mxu0
    %v1815 = vsel %vm707, %v1739, 0
    %1817 = vmatprep.subr.mxu0 0.0
    %1818 = vmatpush1.msra.mxu0 0.0
    %1819 = vmatprep.subr.mxu0 0.0
    %1820 = vmatpush1.msra.mxu0 0.0
    %1821 = vmatprep.subr.mxu0 0.0
    %1822 = vmatpush1.msra.mxu0 0.0
    %1823 = vmatprep.subr.mxu0 0.0
    %1824 = vmatpush1.msra.mxu0 0.0
    %1825 = vmatprep.subr.mxu0 0.0
    %1826 = vmatpush1.msra.mxu0 0.0
    %1827 = vmatprep.subr.mxu0 0.0
    %1828 = vmatpush1.msra.mxu0 0.0
    %1829 = vmatprep.subr.mxu0 0.0
    %1830 = vmatpush1.msra.mxu0 0.0
    %1831 = vmatprep.subr.mxu0 0.0
    %1832 = vmatpush1.msra.mxu0 0.0
    %1833 = vmatprep.subr.mxu0 0.0
    %1834 = vmatpush1.msra.mxu0 0.0
    %1835 = vmatprep.subr.mxu0 0.0
    %1836 = vmatpush1.msra.mxu0 0.0
    %1837 = vmatprep.subr.mxu0 0.0
    %1838 = vmatpush1.msra.mxu0 0.0
    %1839 = vmatprep.subr.mxu0 0.0
    %1840 = vmatpush1.msra.mxu0 0.0
    %1841 = vmatprep.subr.mxu0 0.0
    %1842 = vmatpush1.msra.mxu0 0.0
    %1843 = vmatprep.subr.mxu0 0.0
    %1844 = vmatpush1.msra.mxu0 0.0
    %1845 = vmatprep.subr.mxu0 0.0
    %1846 = vmatpush1.msra.mxu0 0.0
    %1847 = vmatprep.subr.mxu0 0.0
    %1848 = vmatpush1.msra.mxu0 %v1740
    %1849 = vmatprep.subr.mxu0 0.0
    %1850 = vmatpush2.msra.mxu0 0.0
    %1851 = vmatprep.subr.mxu0 0.0
    %1852 = vmatpush2.msra.mxu0 0.0
    %1853 = vmatprep.subr.mxu0 0.0
    %1854 = vmatpush2.msra.mxu0 0.0
    %1855 = vmatprep.subr.mxu0 0.0
    %1856 = vmatpush2.msra.mxu0 0.0
    %1857 = vmatprep.subr.mxu0 0.0
    %1858 = vmatpush2.msra.mxu0 0.0
    %1859 = vmatprep.subr.mxu0 0.0
    %1860 = vmatpush2.msra.mxu0 0.0
    %1861 = vmatprep.subr.mxu0 0.0
    %1862 = vmatpush2.msra.mxu0 0.0
    %1863 = vmatprep.subr.mxu0 0.0
    %1864 = vmatpush2.msra.mxu0 0.0
    %1865 = vmatprep.subr.mxu0 0.0
    %1866 = vmatpush2.msra.mxu0 0.0
    %1867 = vmatprep.subr.mxu0 0.0
    %1868 = vmatpush2.msra.mxu0 0.0
    %1869 = vmatprep.subr.mxu0 0.0
    %1870 = vmatpush2.msra.mxu0 0.0
    %1871 = vmatprep.subr.mxu0 0.0
    %1872 = vmatpush2.msra.mxu0 0.0
    %1873 = vmatprep.subr.mxu0 0.0
    %1874 = vmatpush2.msra.mxu0 0.0
    %1875 = vmatprep.subr.mxu0 0.0
    %1876 = vmatpush2.msra.mxu0 0.0
    %1877 = vmatprep.subr.mxu0 0.0
    %1878 = vmatpush2.msra.mxu0 0.0
    %1879 = vmatprep.subr.mxu0 0.0
    %1880 = vmatpush2.msra.mxu0 0.0
    %1881 = vmatprep.mubr.f32.mxu0 0.0
    %1882 = vmatmul.mubr.f32.gmra.mxu0 %v1815
    %v1883 = vpop.f32.mrf.mxu0
    %v1884 = vadd.f32 0.0, %v1883
    %v1885 = vpop.f32.mrf.mxu0
    %1886 = vdwg.mxu0
    %v1887 = vlaneseq
    %v1888 = vshrl.u32 %v1887, 7
    %v1889 = vsub.s32 0, %v1888
    %v1890 = vrot.slane %v1811, %v1889
    %v1891 = vmul.f32 %v1509, %v1890
    %v1892 = vmul.f32 %v1510, %v1890
    %v1893 = vmul.f32 %v1511, %v1890
    %v1894 = vmul.f32 %v1512, %v1890
    %v1895 = vlaneseq
    %v1896 = vshrl.u32 %v1895, 7
    %v1897 = vsub.s32 0, %v1896
    %v1898 = vrot.slane %v1884, %v1897
    %v1899 = vadd.f32 %v1891, %v1898
    %v1900 = vadd.f32 %v1892, %v1898
    %v1901 = vadd.f32 %v1893, %v1898
    %v1902 = vadd.f32 %v1894, %v1898
    %v1903 = vld [vmem:[%s0] sm:$0xff]
    %v1904 = vld [vmem:[%s0 + $0x8] sm:$0xff]
    %v1905 = vld [vmem:[%s0 + $0x10] sm:$0xff]
    %v1906 = vld [vmem:[%s0 + $0x18] sm:$0xff]
    %v1907 = vadd.f32 %v1899, %v1903
    %v1908 = vadd.f32 %v1900, %v1904
    %v1909 = vadd.f32 %v1901, %v1905
    %v1910 = vadd.f32 %v1902, %v1906
    %v1911 = vmax.f32 %v1907, 0.0
    %v1912 = vmax.f32 %v1908, 0.0
    %v1913 = vmax.f32 %v1909, 0.0
    %v1914 = vmax.f32 %v1910, 0.0
    %1915 = vst [vmem:[#allocation8] sm:$0xff] %v1911
    %1916 = vst [vmem:[#allocation8 + $0x8] sm:$0xff] %v1912
    %1917 = vst [vmem:[#allocation8 + $0x10] sm:$0xff] %v1913
    %1918 = vst [vmem:[#allocation8 + $0x18] sm:$0xff] %v1914
    // Predicated region
    $region46: #{tpu_custom_call.1} parent=1 // pred_check
      _
    $region47: #{tpu_custom_call.1} parent=1 // pred_check_branch
      %1920 = sbr.rel (0) target = $region49
    $region48: #{tpu_custom_call.1} parent=1 // pred_region
      %s1922 = ssub.s32 512, 512
      %1923 = vsyncadd [#allocation5], %s1922
      %s1924 = sshll.u32 [#allocation8], 4
      %s1925 = int_to_ptr.vmem [resolvable:$true] %s1924
      %1930 = dma.vmem_to_hbm [thread:$0]  %s1925, 512, %s9, [#allocation5], 128, 128, 8
    $region49: #{tpu_custom_call.1} parent=1 // pred_fallthru
      _
    // Predicated region
    $region50: #{tpu_custom_call.1} parent=1 // pred_check
      _
    $region51: #{tpu_custom_call.1} parent=1 // pred_check_branch
      %1932 = sbr.rel (0) target = $region53
    $region52: #{tpu_custom_call.1} parent=1 // pred_region
      %1933 = dma.done [#allocation5], 512
    $region53: #{tpu_custom_call.1} parent=1 // pred_fallthru
      _
    %1934 = vsyncpa [#allocation4], 1
    %1935 = vsyncpa [#allocation7], 1
    %1936 = vsyncpa [#allocation5], 1

</llo_original>
